<compile_context>
chip_gen: v6e
topology: v6e:2x2x1
jax: 0.10.0
libtpu: 0.0.40
codegen_flags: <defaults>
</compile_context>

<pallas_src>
import functools
import math

import jax
import jax.numpy as jnp
import numpy as np
from jax.experimental import pallas as pl
from jax.experimental.pallas import tpu as pltpu


# ----------------------------------------------------------------------------
# Single fused kernel.
# ----------------------------------------------------------------------------
def _msa_kernel(xc4_ref, xr4_ref,
                w1_ref, s1_ref, b1_ref, w2_ref, s2_ref, b2_ref,
                wq_ref, wk_ref, wv_ref, bq_ref, bk_ref, bv_ref,
                wo_ref, bo_ref, wf_ref, bff_ref, g_ref, beta_ref,
                seg_eh_ref, seg_he_ref, o_ref,
                *, B, C, E, W2, num_heads, ln_eps):
    BE = B * E
    d = E // num_heads
    scale = 1.0 / math.sqrt(d)

    # ---- in-kernel im2col (3x3, stride 2, pad 1) from parity sub-images ----
    # xc4/xr4 rows are (parity p = 2*(h%2) + (w%2), channel c); columns are
    # (b, oh, ow) flattened, i.e. col = b*E + oh*W2 + ow.
    col = jax.lax.broadcasted_iota(jnp.int32, (C, BE), 1)
    top_row = (col % E) < W2        # oh == 0 -> tap row falls in the zero pad
    left_col = (col % W2) == 0      # ow == 0 -> tap col falls in the zero pad

    def shift_lanes(x, n):          # out[:, i] = x[:, i - n], zero-fill front
        if n == 0:
            return x
        pad = jnp.zeros((x.shape[0], n), x.dtype)
        return jnp.concatenate([pad, x[:, :x.shape[1] - n]], axis=1)

    def im2col(x4):                 # (4C, BE) -> (9C, BE), rows (kh, kw, c)
        zero = jnp.zeros((C, BE), x4.dtype)
        slabs = []
        for kh in range(3):
            for kw in range(3):
                i = 0 if kh == 1 else 1          # source row parity
                j = 0 if kw == 1 else 1          # source col parity
                sub = x4[(2 * i + j) * C:(2 * i + j + 1) * C]
                shift = (W2 if kh == 0 else 0) + (1 if kw == 0 else 0)
                t = shift_lanes(sub, shift)
                if kh == 0:
                    t = jnp.where(top_row, zero, t)
                if kw == 0:
                    t = jnp.where(left_col, zero, t)
                slabs.append(t)
        return jnp.concatenate(slabs, axis=0)

    p_cur = im2col(xc4_ref[...])    # (9C, BE) bf16, shared by the Q branch
    p_ref = im2col(xr4_ref[...])    # (9C, BE) bf16, shared by K and V

    def silu(y):
        return y * jax.nn.sigmoid(y)

    # ---- BaseConv pairs: 3x3-s2 conv + BN + SiLU, then 1x1 conv + BN + SiLU.
    # All batch elements ride the lane axis; weights rows ordered Q | K | V.
    w1 = w1_ref[...]                # (3C, 9C) bf16
    s1 = s1_ref[...]                # (3C, 1) f32
    b1 = b1_ref[...]
    y_q = jnp.dot(w1[:C], p_cur, preferred_element_type=jnp.float32)
    y_kv = jnp.dot(w1[C:], p_ref, preferred_element_type=jnp.float32)
    y_q = silu(y_q * s1[:C] + b1[:C])
    y_kv = silu(y_kv * s1[C:] + b1[C:])

    w2 = w2_ref[...]                # (3C, C) bf16
    s2 = s2_ref[...]
    b2 = b2_ref[...]
    qf = silu(jnp.dot(w2[:C], y_q.astype(jnp.bfloat16),
                      preferred_element_type=jnp.float32) * s2[:C] + b2[:C])
    kf = silu(jnp.dot(w2[C:2 * C], y_kv[:C].astype(jnp.bfloat16),
                      preferred_element_type=jnp.float32)
              * s2[C:2 * C] + b2[C:2 * C])
    vf = silu(jnp.dot(w2[2 * C:], y_kv[C:].astype(jnp.bfloat16),
                      preferred_element_type=jnp.float32)
              * s2[2 * C:] + b2[2 * C:])

    # ---- (C, B*E) -> (B*C, E): row b*C + c = (seq pos b, attn-batch c) -----
    def to_rows(x):
        return jnp.concatenate([x[:, b * E:(b + 1) * E] for b in range(B)], 0)

    qf_r = to_rows(qf)
    kf_r = to_rows(kf)
    vf_r = to_rows(vf)

    # ---- in-projection, batched over all B*C rows (one matmul per weight) --
    def proj(x, w_ref, b_ref):
        return jnp.dot(x.astype(jnp.bfloat16), w_ref[...],
                       preferred_element_type=jnp.float32) + b_ref[...]

    qp = proj(qf_r, wq_ref, bq_ref)         # (B*C, E) f32
    kp = proj(kf_r, wk_ref, bk_ref)
    vp = proj(vf_r, wv_ref, bv_ref)

    # ---- multi-head attention over the tiny sequence dim L = B -------------
    # Per-head reduce / broadcast via 0/1 segment matrices on the lane axis,
    # fully batched over all (l, m) query/key pairs.
    seg_eh = seg_eh_ref[...]                # (E, nh) bf16
    seg_he = seg_he_ref[...]                # (nh, E) bf16
    prod = (qp.reshape(B, 1, C, E) * kp.reshape(1, B, C, E)
            ).reshape(B * B * C, E)         # rows ordered (l, m, c)
    s = jnp.dot(prod.astype(jnp.bfloat16), seg_eh,
                preferred_element_type=jnp.float32) * scale
    s = s.reshape(B, B, C, num_heads)
    p = jnp.exp(s - jnp.max(s, axis=1, keepdims=True))
    inv = pl.reciprocal(jnp.sum(p, axis=1, keepdims=True), approx=True)
    wgt = (p * inv).reshape(B * B * C, num_heads)
    wl = jnp.dot(wgt.astype(jnp.bfloat16), seg_he,
                 preferred_element_type=jnp.float32)      # (B*B*C, E)
    o = jnp.sum(wl.reshape(B, B, C, E) * vp.reshape(1, B, C, E), axis=1)
    o = o.reshape(B * C, E)

    # ---- out-proj + add&LN + FFN + add&LN ----------------------------------
    g = g_ref[...]
    beta = beta_ref[...]

    def layernorm(x):
        mu = jnp.mean(x, axis=-1, keepdims=True)
        xc = x - mu
        var = jnp.mean(xc * xc, axis=-1, keepdims=True)
        return xc * jax.lax.rsqrt(var + ln_eps) * g + beta

    attn = jnp.dot(o.astype(jnp.bfloat16), wo_ref[...],
                   preferred_element_type=jnp.float32) + bo_ref[...]
    x1 = layernorm(attn + qf_r)
    ffn = jnp.dot(x1.astype(jnp.bfloat16), wf_ref[...],
                  preferred_element_type=jnp.float32) + bff_ref[...]
    o_ref[...] = layernorm(x1 + ffn).astype(o_ref.dtype)


# ----------------------------------------------------------------------------
# JAX wrapper: cheap parity relayout (no 9x im2col in HBM) + weight folding.
# ----------------------------------------------------------------------------
def _parity_split(x):
    """(B, C, H, W) -> (4*C, B*(H/2)*(W/2)) bf16 parity relayout."""
    B, C, H, W = x.shape
    H2, W2 = H // 2, W // 2
    x = x.astype(jnp.bfloat16).reshape(B, C, H2, 2, W2, 2)
    x = x.transpose(3, 5, 1, 0, 2, 4)       # (i, j, c, b, h2, w2)
    return x.reshape(4 * C, B * H2 * W2)


def _fold_w3x3(w):
    """(Co, Ci, 3, 3) -> (Co, 9*Ci) with columns ordered (kh, kw, ci)."""
    return jnp.transpose(w, (0, 2, 3, 1)).reshape(w.shape[0], -1)


def msa_forward(ref_x, cur_x, P, num_heads):
    B, C, H, W = cur_x.shape
    assert H % 2 == 0 and W % 2 == 0
    H2, W2 = H // 2, W // 2
    E = H2 * W2
    assert E % num_heads == 0
    d = E // num_heads
    bf = jnp.bfloat16

    xc4 = _parity_split(cur_x)               # (4C, B*E) bf16
    xr4 = _parity_split(ref_x)

    # Conv weights, rows ordered Q | K | V; BN folded (eval mode).
    w1 = jnp.concatenate([_fold_w3x3(P[k]["w1"]) for k in ("Q", "K", "V")], 0)
    s1 = jnp.concatenate([P[k]["s1"] for k in ("Q", "K", "V")]).reshape(3 * C, 1)
    b1 = jnp.concatenate([P[k]["b1"] for k in ("Q", "K", "V")]).reshape(3 * C, 1)
    w2 = jnp.concatenate([P[k]["w2"].reshape(C, C) for k in ("Q", "K", "V")], 0)
    s2 = jnp.concatenate([P[k]["s2"] for k in ("Q", "K", "V")]).reshape(3 * C, 1)
    b2 = jnp.concatenate([P[k]["b2"] for k in ("Q", "K", "V")]).reshape(3 * C, 1)

    Wi, bi = P["in_proj_w"], P["in_proj_b"]
    wq = Wi[:E].T.astype(bf)
    wk = Wi[E:2 * E].T.astype(bf)
    wv = Wi[2 * E:].T.astype(bf)
    bq = bi[:E].reshape(1, E)
    bk = bi[E:2 * E].reshape(1, E)
    bv = bi[2 * E:].reshape(1, E)
    wo = P["out_proj_w"].T.astype(bf)
    bo = P["out_proj_b"].reshape(1, E)
    wf = P["ffn_w"].T.astype(bf)
    bff = P["ffn_b"].reshape(1, E)
    g = P["ln_g"].reshape(1, E)
    beta = P["ln_b"].reshape(1, E)

    # 0/1 head segment matrices (exact in bf16): lane e belongs to head e // d.
    seg = (jnp.arange(E)[:, None] // d ==
           jnp.arange(num_heads)[None, :]).astype(bf)        # (E, nh)

    kern = functools.partial(_msa_kernel, B=B, C=C, E=E, W2=W2,
                             num_heads=num_heads, ln_eps=1e-5)

    def spec(shape):
        zeros = (0,) * len(shape)
        return pl.BlockSpec(shape, lambda i, _z=zeros: _z)

    args = (xc4, xr4,
            w1.astype(bf), s1, b1, w2.astype(bf), s2, b2,
            wq, wk, wv, bq, bk, bv, wo, bo, wf, bff, g, beta,
            seg, seg.T)
    out = pl.pallas_call(
        kern,
        out_shape=jax.ShapeDtypeStruct((B * C, E), jnp.float32),
        grid=(1,),
        in_specs=[spec(a.shape) for a in args],
        out_specs=spec((B * C, E)),
        compiler_params=pltpu.CompilerParams(
            dimension_semantics=("arbitrary",),
            vmem_limit_bytes=32 * 1024 * 1024),
    )(*args)
    # Raw relayout the PyTorch module performs: (L=B, N=C, E) -> (B, C//4, H, W).
    return out.reshape(B, C // 4, H, W)


# ----------------------------------------------------------------------------
# Parameter init (deterministic, synthetic; BN folded eval-mode, eps=1e-3)
# ----------------------------------------------------------------------------
def init_params(key, C, E):
    keys = iter(jax.random.split(key, 64))

    def nrm(shape, scale):
        return jax.random.normal(next(keys), shape, jnp.float32) * scale

    def bn_fold(cout):
        gamma = 1.0 + 0.1 * jax.random.normal(next(keys), (cout,), jnp.float32)
        beta = 0.1 * jax.random.normal(next(keys), (cout,), jnp.float32)
        mean = 0.1 * jax.random.normal(next(keys), (cout,), jnp.float32)
        var = jax.random.uniform(next(keys), (cout,), jnp.float32, 0.5, 1.5)
        s = gamma / jnp.sqrt(var + 1e-3)
        b = beta - mean * s
        return s, b

    def branch():
        w1 = nrm((C, C, 3, 3), 1.0 / math.sqrt(C * 9))
        s1, b1 = bn_fold(C)
        w2 = nrm((C, C, 1, 1), 1.0 / math.sqrt(C))
        s2, b2 = bn_fold(C)
        return {"w1": w1, "w2": w2, "s1": s1, "b1": b1, "s2": s2, "b2": b2}

    return {
        "K": branch(), "V": branch(), "Q": branch(),
        "in_proj_w": nrm((3 * E, E), 1.0 / math.sqrt(E)),
        "in_proj_b": 0.05 * jax.random.normal(next(keys), (3 * E,), jnp.float32),
        "out_proj_w": nrm((E, E), 1.0 / math.sqrt(E)),
        "out_proj_b": 0.05 * jax.random.normal(next(keys), (E,), jnp.float32),
        "ln_g": 1.0 + 0.1 * jax.random.normal(next(keys), (E,), jnp.float32),
        "ln_b": 0.1 * jax.random.normal(next(keys), (E,), jnp.float32),
        "ffn_w": nrm((E, E), 1.0 / math.sqrt(E)),
        "ffn_b": 0.05 * jax.random.normal(next(keys), (E,), jnp.float32),
    }


# ----------------------------------------------------------------------------
# Pure-JAX reference (bf16 matmul operands / f32 accumulation to match the
# kernel's MXU precision; attention core in f32).
# ----------------------------------------------------------------------------
def reference_forward(ref_x, cur_x, P, num_heads):
    B, C, H, W = cur_x.shape
    E = (H // 2) * (W // 2)
    d = E // num_heads

    def mm(x, w):
        return jnp.dot(x.astype(jnp.bfloat16), w.astype(jnp.bfloat16),
                       preferred_element_type=jnp.float32)

    def base_conv(x, w, scale, bias, stride):
        pad = (w.shape[-1] - 1) // 2
        y = jax.lax.conv_general_dilated(
            x.astype(jnp.bfloat16), w.astype(jnp.bfloat16),
            (stride, stride), [(pad, pad), (pad, pad)],
            dimension_numbers=("NCHW", "OIHW", "NCHW"),
            preferred_element_type=jnp.float32)
        y = y * scale[None, :, None, None] + bias[None, :, None, None]
        return y * jax.nn.sigmoid(y)

    def branch(x, p):
        y = base_conv(x, p["w1"], p["s1"], p["b1"], 2)
        return base_conv(y, p["w2"], p["s2"], p["b2"], 1)

    Kf, Vf, Qf = branch(ref_x, P["K"]), branch(ref_x, P["V"]), branch(cur_x, P["Q"])
    q, k, v = Qf.reshape(B, C, E), Kf.reshape(B, C, E), Vf.reshape(B, C, E)

    Wi, bi = P["in_proj_w"], P["in_proj_b"]
    qp = mm(q, Wi[:E].T) + bi[:E]
    kp = mm(k, Wi[E:2 * E].T) + bi[E:2 * E]
    vp = mm(v, Wi[2 * E:].T) + bi[2 * E:]

    def split(x):  # (L,N,E) -> (N, nh, L, d)
        return x.reshape(B, C, num_heads, d).transpose(1, 2, 0, 3)

    qh, kh, vh = split(qp), split(kp), split(vp)
    s = jnp.einsum("nhld,nhmd->nhlm", qh, kh) / math.sqrt(d)
    p_ = jax.nn.softmax(s, axis=-1)
    o = jnp.einsum("nhlm,nhmd->nhld", p_, vh)
    o = o.transpose(2, 0, 1, 3).reshape(B, C, E)
    attn = mm(o, P["out_proj_w"].T) + P["out_proj_b"]

    def ln(x):
        mu = jnp.mean(x, axis=-1, keepdims=True)
        var = jnp.mean((x - mu) ** 2, axis=-1, keepdims=True)
        return (x - mu) / jnp.sqrt(var + 1e-5) * P["ln_g"] + P["ln_b"]

    a1 = ln(attn + q)
    a2 = ln(a1 + mm(a1, P["ffn_w"].T) + P["ffn_b"])
    return a2.reshape(B, C // 4, H, W)


# ----------------------------------------------------------------------------
if __name__ == "__main__":
    # Small shapes consistent with the module: C divisible by 4,
    # E = (H/2)*(W/2) = 64 is the MHA embed dim, 8 heads.
    B, C, H, W = 2, 8, 16, 16
    num_heads = 8
    E = (H // 2) * (W // 2)

    key = jax.random.PRNGKey(0)
    kparam, kref, kcur = jax.random.split(key, 3)
    params = init_params(kparam, C, E)
    ref_x = jax.random.normal(kref, (B, C, H, W), jnp.float32)
    cur_x = jax.random.normal(kcur, (B, C, H, W), jnp.float32)

    fwd = jax.jit(msa_forward, static_argnums=3)
    out = jax.block_until_ready(fwd(ref_x, cur_x, params, num_heads))
    assert out.shape == (B, C // 4, H, W)

    ref_out = jax.block_until_ready(
        reference_forward(ref_x, cur_x, params, num_heads))
    # Tolerance accounts for bf16 MXU operands (incl. the score / probability
    # segment matmuls) and the approx softmax reciprocal.
    np.testing.assert_allclose(np.asarray(out), np.asarray(ref_out),
                               rtol=2e-2, atol=2e-2)
    print("KERNEL_OK")
</pallas_src>

<mosaic_0001>
module attributes {stable_mosaic.version = 11 : i64} {
  func.func @_msa_kernel(%arg0: i32, %arg1: memref<32x128xbf16, #tpu.memory_space<vmem>>, %arg2: memref<32x128xbf16, #tpu.memory_space<vmem>>, %arg3: memref<24x72xbf16, #tpu.memory_space<vmem>>, %arg4: memref<24x1xf32, #tpu.memory_space<vmem>>, %arg5: memref<24x1xf32, #tpu.memory_space<vmem>>, %arg6: memref<24x8xbf16, #tpu.memory_space<vmem>>, %arg7: memref<24x1xf32, #tpu.memory_space<vmem>>, %arg8: memref<24x1xf32, #tpu.memory_space<vmem>>, %arg9: memref<64x64xbf16, #tpu.memory_space<vmem>>, %arg10: memref<64x64xbf16, #tpu.memory_space<vmem>>, %arg11: memref<64x64xbf16, #tpu.memory_space<vmem>>, %arg12: memref<1x64xf32, #tpu.memory_space<vmem>>, %arg13: memref<1x64xf32, #tpu.memory_space<vmem>>, %arg14: memref<1x64xf32, #tpu.memory_space<vmem>>, %arg15: memref<64x64xbf16, #tpu.memory_space<vmem>>, %arg16: memref<1x64xf32, #tpu.memory_space<vmem>>, %arg17: memref<64x64xbf16, #tpu.memory_space<vmem>>, %arg18: memref<1x64xf32, #tpu.memory_space<vmem>>, %arg19: memref<1x64xf32, #tpu.memory_space<vmem>>, %arg20: memref<1x64xf32, #tpu.memory_space<vmem>>, %arg21: memref<64x8xbf16, #tpu.memory_space<vmem>>, %arg22: memref<8x64xbf16, #tpu.memory_space<vmem>>, %arg23: memref<16x64xf32, #tpu.memory_space<vmem>>) attributes {dimension_semantics = [#tpu.dimension_semantics<arbitrary>], iteration_bounds = array<i64: 1>, scalar_prefetch = 0 : i64, scratch_operands = 0 : i64, tpu.core_type = #tpu.core_type<tc>, window_params = [{pipeline_mode = #tpu.pipeline_mode<synchronous>, transform_indices = @transform_0, window_bounds = array<i64: 32, 128>}, {pipeline_mode = #tpu.pipeline_mode<synchronous>, transform_indices = @transform_1, window_bounds = array<i64: 32, 128>}, {pipeline_mode = #tpu.pipeline_mode<synchronous>, transform_indices = @transform_2, window_bounds = array<i64: 24, 72>}, {pipeline_mode = #tpu.pipeline_mode<synchronous>, transform_indices = @transform_3, window_bounds = array<i64: 24, 1>}, {pipeline_mode = #tpu.pipeline_mode<synchronous>, transform_indices = @transform_4, window_bounds = array<i64: 24, 1>}, {pipeline_mode = #tpu.pipeline_mode<synchronous>, transform_indices = @transform_5, window_bounds = array<i64: 24, 8>}, {pipeline_mode = #tpu.pipeline_mode<synchronous>, transform_indices = @transform_6, window_bounds = array<i64: 24, 1>}, {pipeline_mode = #tpu.pipeline_mode<synchronous>, transform_indices = @transform_7, window_bounds = array<i64: 24, 1>}, {pipeline_mode = #tpu.pipeline_mode<synchronous>, transform_indices = @transform_8, window_bounds = array<i64: 64, 64>}, {pipeline_mode = #tpu.pipeline_mode<synchronous>, transform_indices = @transform_9, window_bounds = array<i64: 64, 64>}, {pipeline_mode = #tpu.pipeline_mode<synchronous>, transform_indices = @transform_10, window_bounds = array<i64: 64, 64>}, {pipeline_mode = #tpu.pipeline_mode<synchronous>, transform_indices = @transform_11, window_bounds = array<i64: 1, 64>}, {pipeline_mode = #tpu.pipeline_mode<synchronous>, transform_indices = @transform_12, window_bounds = array<i64: 1, 64>}, {pipeline_mode = #tpu.pipeline_mode<synchronous>, transform_indices = @transform_13, window_bounds = array<i64: 1, 64>}, {pipeline_mode = #tpu.pipeline_mode<synchronous>, transform_indices = @transform_14, window_bounds = array<i64: 64, 64>}, {pipeline_mode = #tpu.pipeline_mode<synchronous>, transform_indices = @transform_15, window_bounds = array<i64: 1, 64>}, {pipeline_mode = #tpu.pipeline_mode<synchronous>, transform_indices = @transform_16, window_bounds = array<i64: 64, 64>}, {pipeline_mode = #tpu.pipeline_mode<synchronous>, transform_indices = @transform_17, window_bounds = array<i64: 1, 64>}, {pipeline_mode = #tpu.pipeline_mode<synchronous>, transform_indices = @transform_18, window_bounds = array<i64: 1, 64>}, {pipeline_mode = #tpu.pipeline_mode<synchronous>, transform_indices = @transform_19, window_bounds = array<i64: 1, 64>}, {pipeline_mode = #tpu.pipeline_mode<synchronous>, transform_indices = @transform_20, window_bounds = array<i64: 64, 8>}, {pipeline_mode = #tpu.pipeline_mode<synchronous>, transform_indices = @transform_21, window_bounds = array<i64: 8, 64>}, {pipeline_mode = #tpu.pipeline_mode<synchronous>, transform_indices = @transform_22, window_bounds = array<i64: 16, 64>}]} {
    %0 = tpu.iota {dimensions = array<i32: 1>} : vector<8x128xi32>
    %c64_i32 = arith.constant 64 : i32
    %c0_i32 = arith.constant 0 : i32
    %1 = arith.cmpi eq, %c64_i32, %c0_i32 : i32
    %c1_i32 = arith.constant 1 : i32
    %2 = arith.select %1, %c1_i32, %c64_i32 : i32
    %3 = vector.broadcast %2 : i32 to vector<8x128xi32>
    %4 = arith.remsi %0, %3 : vector<8x128xi32>
    %c0_i32_0 = arith.constant 0 : i32
    %5 = vector.broadcast %c0_i32_0 : i32 to vector<8x128xi32>
    %6 = arith.cmpi ne, %4, %5 : vector<8x128xi32>
    %c0_i32_1 = arith.constant 0 : i32
    %7 = vector.broadcast %c0_i32_1 : i32 to vector<8x128xi32>
    %8 = arith.cmpi slt, %4, %7 : vector<8x128xi32>
    %c0_i32_2 = arith.constant 0 : i32
    %9 = arith.cmpi slt, %2, %c0_i32_2 : i32
    %10 = vector.broadcast %9 : i1 to vector<8x128xi1>
    %11 = vector.broadcast %10 : vector<8x128xi1> to vector<8x128xi1>
    %12 = arith.xori %8, %11 : vector<8x128xi1>
    %13 = arith.andi %12, %6 : vector<8x128xi1>
    %14 = vector.broadcast %2 : i32 to vector<8x128xi32>
    %15 = arith.addi %4, %14 : vector<8x128xi32>
    %16 = arith.select %13, %15, %4 : vector<8x128xi1>, vector<8x128xi32>
    %c8_i32 = arith.constant 8 : i32
    %17 = vector.broadcast %c8_i32 : i32 to vector<8x128xi32>
    %18 = arith.cmpi slt, %16, %17 : vector<8x128xi32>
    %c8_i32_3 = arith.constant 8 : i32
    %c0_i32_4 = arith.constant 0 : i32
    %19 = arith.cmpi eq, %c8_i32_3, %c0_i32_4 : i32
    %c1_i32_5 = arith.constant 1 : i32
    %20 = arith.select %19, %c1_i32_5, %c8_i32_3 : i32
    %21 = vector.broadcast %20 : i32 to vector<8x128xi32>
    %22 = arith.remsi %0, %21 : vector<8x128xi32>
    %c0_i32_6 = arith.constant 0 : i32
    %23 = vector.broadcast %c0_i32_6 : i32 to vector<8x128xi32>
    %24 = arith.cmpi ne, %22, %23 : vector<8x128xi32>
    %c0_i32_7 = arith.constant 0 : i32
    %25 = vector.broadcast %c0_i32_7 : i32 to vector<8x128xi32>
    %26 = arith.cmpi slt, %22, %25 : vector<8x128xi32>
    %c0_i32_8 = arith.constant 0 : i32
    %27 = arith.cmpi slt, %20, %c0_i32_8 : i32
    %28 = vector.broadcast %27 : i1 to vector<8x128xi1>
    %29 = vector.broadcast %28 : vector<8x128xi1> to vector<8x128xi1>
    %30 = arith.xori %26, %29 : vector<8x128xi1>
    %31 = arith.andi %30, %24 : vector<8x128xi1>
    %32 = vector.broadcast %20 : i32 to vector<8x128xi32>
    %33 = arith.addi %22, %32 : vector<8x128xi32>
    %34 = arith.select %31, %33, %22 : vector<8x128xi1>, vector<8x128xi32>
    %c0_i32_9 = arith.constant 0 : i32
    %35 = vector.broadcast %c0_i32_9 : i32 to vector<8x128xi32>
    %36 = arith.cmpi eq, %34, %35 : vector<8x128xi32>
    %c0 = arith.constant 0 : index
    %c0_10 = arith.constant 0 : index
    %37 = vector.load %arg1[%c0, %c0_10] : memref<32x128xbf16, #tpu.memory_space<vmem>>, vector<32x128xbf16>
    %cst = arith.constant 0.000000e+00 : bf16
    %38 = vector.broadcast %cst : bf16 to vector<8x128xbf16>
    %39 = vector.extract_strided_slice %37 {offsets = [24, 0], sizes = [8, 128], strides = [1, 1]} : vector<32x128xbf16> to vector<8x128xbf16>
    %cst_11 = arith.constant 0.000000e+00 : bf16
    %40 = vector.broadcast %cst_11 : bf16 to vector<8x9xbf16>
    %41 = vector.extract_strided_slice %39 {offsets = [0, 0], sizes = [8, 119], strides = [1, 1]} : vector<8x128xbf16> to vector<8x119xbf16>
    %42 = tpu.concatenate %40, %41 in 1 : vector<8x9xbf16>, vector<8x119xbf16> -> vector<8x128xbf16>
    %43 = arith.select %18, %38, %42 : vector<8x128xi1>, vector<8x128xbf16>
    %44 = arith.select %36, %38, %43 : vector<8x128xi1>, vector<8x128xbf16>
    %45 = vector.extract_strided_slice %37 {offsets = [16, 0], sizes = [8, 128], strides = [1, 1]} : vector<32x128xbf16> to vector<8x128xbf16>
    %cst_12 = arith.constant 0.000000e+00 : bf16
    %46 = vector.broadcast %cst_12 : bf16 to vector<8x8xbf16>
    %47 = vector.extract_strided_slice %45 {offsets = [0, 0], sizes = [8, 120], strides = [1, 1]} : vector<8x128xbf16> to vector<8x120xbf16>
    %48 = tpu.concatenate %46, %47 in 1 : vector<8x8xbf16>, vector<8x120xbf16> -> vector<8x128xbf16>
    %49 = arith.select %18, %38, %48 : vector<8x128xi1>, vector<8x128xbf16>
    %50 = vector.extract_strided_slice %37 {offsets = [24, 0], sizes = [8, 128], strides = [1, 1]} : vector<32x128xbf16> to vector<8x128xbf16>
    %cst_13 = arith.constant 0.000000e+00 : bf16
    %51 = vector.broadcast %cst_13 : bf16 to vector<8x8xbf16>
    %52 = vector.extract_strided_slice %50 {offsets = [0, 0], sizes = [8, 120], strides = [1, 1]} : vector<8x128xbf16> to vector<8x120xbf16>
    %53 = tpu.concatenate %51, %52 in 1 : vector<8x8xbf16>, vector<8x120xbf16> -> vector<8x128xbf16>
    %54 = arith.select %18, %38, %53 : vector<8x128xi1>, vector<8x128xbf16>
    %55 = vector.extract_strided_slice %37 {offsets = [8, 0], sizes = [8, 128], strides = [1, 1]} : vector<32x128xbf16> to vector<8x128xbf16>
    %cst_14 = arith.constant 0.000000e+00 : bf16
    %56 = vector.broadcast %cst_14 : bf16 to vector<8x1xbf16>
    %57 = vector.extract_strided_slice %55 {offsets = [0, 0], sizes = [8, 127], strides = [1, 1]} : vector<8x128xbf16> to vector<8x127xbf16>
    %58 = tpu.concatenate %56, %57 in 1 : vector<8x1xbf16>, vector<8x127xbf16> -> vector<8x128xbf16>
    %59 = arith.select %36, %38, %58 : vector<8x128xi1>, vector<8x128xbf16>
    %60 = vector.extract_strided_slice %37 {offsets = [0, 0], sizes = [8, 128], strides = [1, 1]} : vector<32x128xbf16> to vector<8x128xbf16>
    %61 = vector.extract_strided_slice %37 {offsets = [8, 0], sizes = [8, 128], strides = [1, 1]} : vector<32x128xbf16> to vector<8x128xbf16>
    %62 = vector.extract_strided_slice %37 {offsets = [24, 0], sizes = [8, 128], strides = [1, 1]} : vector<32x128xbf16> to vector<8x128xbf16>
    %cst_15 = arith.constant 0.000000e+00 : bf16
    %63 = vector.broadcast %cst_15 : bf16 to vector<8x1xbf16>
    %64 = vector.extract_strided_slice %62 {offsets = [0, 0], sizes = [8, 127], strides = [1, 1]} : vector<8x128xbf16> to vector<8x127xbf16>
    %65 = tpu.concatenate %63, %64 in 1 : vector<8x1xbf16>, vector<8x127xbf16> -> vector<8x128xbf16>
    %66 = arith.select %36, %38, %65 : vector<8x128xi1>, vector<8x128xbf16>
    %67 = vector.extract_strided_slice %37 {offsets = [16, 0], sizes = [8, 128], strides = [1, 1]} : vector<32x128xbf16> to vector<8x128xbf16>
    %68 = vector.extract_strided_slice %37 {offsets = [24, 0], sizes = [8, 128], strides = [1, 1]} : vector<32x128xbf16> to vector<8x128xbf16>
    %69 = tpu.concatenate %44, %49, %54, %59, %60, %61, %66, %67, %68 in 0 : vector<8x128xbf16>, vector<8x128xbf16>, vector<8x128xbf16>, vector<8x128xbf16>, vector<8x128xbf16>, vector<8x128xbf16>, vector<8x128xbf16>, vector<8x128xbf16>, vector<8x128xbf16> -> vector<72x128xbf16>
    %c0_16 = arith.constant 0 : index
    %c0_17 = arith.constant 0 : index
    %70 = vector.load %arg2[%c0_16, %c0_17] : memref<32x128xbf16, #tpu.memory_space<vmem>>, vector<32x128xbf16>
    %cst_18 = arith.constant 0.000000e+00 : bf16
    %71 = vector.broadcast %cst_18 : bf16 to vector<8x128xbf16>
    %72 = vector.extract_strided_slice %70 {offsets = [24, 0], sizes = [8, 128], strides = [1, 1]} : vector<32x128xbf16> to vector<8x128xbf16>
    %cst_19 = arith.constant 0.000000e+00 : bf16
    %73 = vector.broadcast %cst_19 : bf16 to vector<8x9xbf16>
    %74 = vector.extract_strided_slice %72 {offsets = [0, 0], sizes = [8, 119], strides = [1, 1]} : vector<8x128xbf16> to vector<8x119xbf16>
    %75 = tpu.concatenate %73, %74 in 1 : vector<8x9xbf16>, vector<8x119xbf16> -> vector<8x128xbf16>
    %76 = arith.select %18, %71, %75 : vector<8x128xi1>, vector<8x128xbf16>
    %77 = arith.select %36, %71, %76 : vector<8x128xi1>, vector<8x128xbf16>
    %78 = vector.extract_strided_slice %70 {offsets = [16, 0], sizes = [8, 128], strides = [1, 1]} : vector<32x128xbf16> to vector<8x128xbf16>
    %cst_20 = arith.constant 0.000000e+00 : bf16
    %79 = vector.broadcast %cst_20 : bf16 to vector<8x8xbf16>
    %80 = vector.extract_strided_slice %78 {offsets = [0, 0], sizes = [8, 120], strides = [1, 1]} : vector<8x128xbf16> to vector<8x120xbf16>
    %81 = tpu.concatenate %79, %80 in 1 : vector<8x8xbf16>, vector<8x120xbf16> -> vector<8x128xbf16>
    %82 = arith.select %18, %71, %81 : vector<8x128xi1>, vector<8x128xbf16>
    %83 = vector.extract_strided_slice %70 {offsets = [24, 0], sizes = [8, 128], strides = [1, 1]} : vector<32x128xbf16> to vector<8x128xbf16>
    %cst_21 = arith.constant 0.000000e+00 : bf16
    %84 = vector.broadcast %cst_21 : bf16 to vector<8x8xbf16>
    %85 = vector.extract_strided_slice %83 {offsets = [0, 0], sizes = [8, 120], strides = [1, 1]} : vector<8x128xbf16> to vector<8x120xbf16>
    %86 = tpu.concatenate %84, %85 in 1 : vector<8x8xbf16>, vector<8x120xbf16> -> vector<8x128xbf16>
    %87 = arith.select %18, %71, %86 : vector<8x128xi1>, vector<8x128xbf16>
    %88 = vector.extract_strided_slice %70 {offsets = [8, 0], sizes = [8, 128], strides = [1, 1]} : vector<32x128xbf16> to vector<8x128xbf16>
    %cst_22 = arith.constant 0.000000e+00 : bf16
    %89 = vector.broadcast %cst_22 : bf16 to vector<8x1xbf16>
    %90 = vector.extract_strided_slice %88 {offsets = [0, 0], sizes = [8, 127], strides = [1, 1]} : vector<8x128xbf16> to vector<8x127xbf16>
    %91 = tpu.concatenate %89, %90 in 1 : vector<8x1xbf16>, vector<8x127xbf16> -> vector<8x128xbf16>
    %92 = arith.select %36, %71, %91 : vector<8x128xi1>, vector<8x128xbf16>
    %93 = vector.extract_strided_slice %70 {offsets = [0, 0], sizes = [8, 128], strides = [1, 1]} : vector<32x128xbf16> to vector<8x128xbf16>
    %94 = vector.extract_strided_slice %70 {offsets = [8, 0], sizes = [8, 128], strides = [1, 1]} : vector<32x128xbf16> to vector<8x128xbf16>
    %95 = vector.extract_strided_slice %70 {offsets = [24, 0], sizes = [8, 128], strides = [1, 1]} : vector<32x128xbf16> to vector<8x128xbf16>
    %cst_23 = arith.constant 0.000000e+00 : bf16
    %96 = vector.broadcast %cst_23 : bf16 to vector<8x1xbf16>
    %97 = vector.extract_strided_slice %95 {offsets = [0, 0], sizes = [8, 127], strides = [1, 1]} : vector<8x128xbf16> to vector<8x127xbf16>
    %98 = tpu.concatenate %96, %97 in 1 : vector<8x1xbf16>, vector<8x127xbf16> -> vector<8x128xbf16>
    %99 = arith.select %36, %71, %98 : vector<8x128xi1>, vector<8x128xbf16>
    %100 = vector.extract_strided_slice %70 {offsets = [16, 0], sizes = [8, 128], strides = [1, 1]} : vector<32x128xbf16> to vector<8x128xbf16>
    %101 = vector.extract_strided_slice %70 {offsets = [24, 0], sizes = [8, 128], strides = [1, 1]} : vector<32x128xbf16> to vector<8x128xbf16>
    %102 = tpu.concatenate %77, %82, %87, %92, %93, %94, %99, %100, %101 in 0 : vector<8x128xbf16>, vector<8x128xbf16>, vector<8x128xbf16>, vector<8x128xbf16>, vector<8x128xbf16>, vector<8x128xbf16>, vector<8x128xbf16>, vector<8x128xbf16>, vector<8x128xbf16> -> vector<72x128xbf16>
    %c0_24 = arith.constant 0 : index
    %c0_25 = arith.constant 0 : index
    %103 = vector.load %arg3[%c0_24, %c0_25] : memref<24x72xbf16, #tpu.memory_space<vmem>>, vector<24x72xbf16>
    %c0_26 = arith.constant 0 : index
    %c0_27 = arith.constant 0 : index
    %104 = vector.load %arg4[%c0_26, %c0_27] : memref<24x1xf32, #tpu.memory_space<vmem>>, vector<24x1xf32>
    %c0_28 = arith.constant 0 : index
    %c0_29 = arith.constant 0 : index
    %105 = vector.load %arg5[%c0_28, %c0_29] : memref<24x1xf32, #tpu.memory_space<vmem>>, vector<24x1xf32>
    %106 = vector.extract_strided_slice %103 {offsets = [0, 0], sizes = [8, 72], strides = [1, 1]} : vector<24x72xbf16> to vector<8x72xbf16>
    %cst_30 = arith.constant dense<0.000000e+00> : vector<8x128xf32>
    %107 = tpu.matmul %106, %69, %cst_30 {dimension_numbers = #tpu.dot_dimension_numbers<[1], [0], [0], [1], [0, 0, 1, 1], [], []>} : vector<8x72xbf16>, vector<72x128xbf16>, vector<8x128xf32> -> vector<8x128xf32>
    %108 = vector.extract_strided_slice %103 {offsets = [8, 0], sizes = [16, 72], strides = [1, 1]} : vector<24x72xbf16> to vector<16x72xbf16>
    %cst_31 = arith.constant dense<0.000000e+00> : vector<16x128xf32>
    %109 = tpu.matmul %108, %102, %cst_31 {dimension_numbers = #tpu.dot_dimension_numbers<[1], [0], [0], [1], [0, 0, 1, 1], [], []>} : vector<16x72xbf16>, vector<72x128xbf16>, vector<16x128xf32> -> vector<16x128xf32>
    %110 = vector.extract_strided_slice %104 {offsets = [0, 0], sizes = [8, 1], strides = [1, 1]} : vector<24x1xf32> to vector<8x1xf32>
    %111 = vector.broadcast %110 : vector<8x1xf32> to vector<8x128xf32>
    %112 = arith.mulf %107, %111 : vector<8x128xf32>
    %113 = vector.extract_strided_slice %105 {offsets = [0, 0], sizes = [8, 1], strides = [1, 1]} : vector<24x1xf32> to vector<8x1xf32>
    %114 = vector.broadcast %113 : vector<8x1xf32> to vector<8x128xf32>
    %115 = arith.addf %112, %114 : vector<8x128xf32>
    %116 = arith.negf %115 : vector<8x128xf32>
    %117 = math.exp %116 : vector<8x128xf32>
    %cst_32 = arith.constant 1.000000e+00 : f32
    %118 = vector.broadcast %cst_32 : f32 to vector<8x128xf32>
    %119 = arith.addf %118, %117 : vector<8x128xf32>
    %120 = arith.divf %118, %119 : vector<8x128xf32>
    %121 = arith.mulf %115, %120 : vector<8x128xf32>
    %122 = vector.extract_strided_slice %104 {offsets = [8, 0], sizes = [16, 1], strides = [1, 1]} : vector<24x1xf32> to vector<16x1xf32>
    %123 = vector.broadcast %122 : vector<16x1xf32> to vector<16x128xf32>
    %124 = arith.mulf %109, %123 : vector<16x128xf32>
    %125 = vector.extract_strided_slice %105 {offsets = [8, 0], sizes = [16, 1], strides = [1, 1]} : vector<24x1xf32> to vector<16x1xf32>
    %126 = vector.broadcast %125 : vector<16x1xf32> to vector<16x128xf32>
    %127 = arith.addf %124, %126 : vector<16x128xf32>
    %128 = arith.negf %127 : vector<16x128xf32>
    %129 = math.exp %128 : vector<16x128xf32>
    %cst_33 = arith.constant 1.000000e+00 : f32
    %130 = vector.broadcast %cst_33 : f32 to vector<16x128xf32>
    %131 = arith.addf %130, %129 : vector<16x128xf32>
    %132 = arith.divf %130, %131 : vector<16x128xf32>
    %133 = arith.mulf %127, %132 : vector<16x128xf32>
    %c0_34 = arith.constant 0 : index
    %c0_35 = arith.constant 0 : index
    %134 = vector.load %arg6[%c0_34, %c0_35] : memref<24x8xbf16, #tpu.memory_space<vmem>>, vector<24x8xbf16>
    %c0_36 = arith.constant 0 : index
    %c0_37 = arith.constant 0 : index
    %135 = vector.load %arg7[%c0_36, %c0_37] : memref<24x1xf32, #tpu.memory_space<vmem>>, vector<24x1xf32>
    %c0_38 = arith.constant 0 : index
    %c0_39 = arith.constant 0 : index
    %136 = vector.load %arg8[%c0_38, %c0_39] : memref<24x1xf32, #tpu.memory_space<vmem>>, vector<24x1xf32>
    %137 = vector.extract_strided_slice %134 {offsets = [0, 0], sizes = [8, 8], strides = [1, 1]} : vector<24x8xbf16> to vector<8x8xbf16>
    %138 = arith.truncf %121 : vector<8x128xf32> to vector<8x128xbf16>
    %cst_40 = arith.constant dense<0.000000e+00> : vector<8x128xf32>
    %139 = tpu.matmul %137, %138, %cst_40 {dimension_numbers = #tpu.dot_dimension_numbers<[1], [0], [0], [1], [0, 0, 1, 1], [], []>} : vector<8x8xbf16>, vector<8x128xbf16>, vector<8x128xf32> -> vector<8x128xf32>
    %140 = vector.extract_strided_slice %135 {offsets = [0, 0], sizes = [8, 1], strides = [1, 1]} : vector<24x1xf32> to vector<8x1xf32>
    %141 = vector.broadcast %140 : vector<8x1xf32> to vector<8x128xf32>
    %142 = arith.mulf %139, %141 : vector<8x128xf32>
    %143 = vector.extract_strided_slice %136 {offsets = [0, 0], sizes = [8, 1], strides = [1, 1]} : vector<24x1xf32> to vector<8x1xf32>
    %144 = vector.broadcast %143 : vector<8x1xf32> to vector<8x128xf32>
    %145 = arith.addf %142, %144 : vector<8x128xf32>
    %146 = arith.negf %145 : vector<8x128xf32>
    %147 = math.exp %146 : vector<8x128xf32>
    %cst_41 = arith.constant 1.000000e+00 : f32
    %148 = vector.broadcast %cst_41 : f32 to vector<8x128xf32>
    %149 = arith.addf %148, %147 : vector<8x128xf32>
    %150 = arith.divf %148, %149 : vector<8x128xf32>
    %151 = arith.mulf %145, %150 : vector<8x128xf32>
    %152 = vector.extract_strided_slice %134 {offsets = [8, 0], sizes = [8, 8], strides = [1, 1]} : vector<24x8xbf16> to vector<8x8xbf16>
    %153 = vector.extract_strided_slice %133 {offsets = [0, 0], sizes = [8, 128], strides = [1, 1]} : vector<16x128xf32> to vector<8x128xf32>
    %154 = arith.truncf %153 : vector<8x128xf32> to vector<8x128xbf16>
    %cst_42 = arith.constant dense<0.000000e+00> : vector<8x128xf32>
    %155 = tpu.matmul %152, %154, %cst_42 {dimension_numbers = #tpu.dot_dimension_numbers<[1], [0], [0], [1], [0, 0, 1, 1], [], []>} : vector<8x8xbf16>, vector<8x128xbf16>, vector<8x128xf32> -> vector<8x128xf32>
    %156 = vector.extract_strided_slice %135 {offsets = [8, 0], sizes = [8, 1], strides = [1, 1]} : vector<24x1xf32> to vector<8x1xf32>
    %157 = vector.broadcast %156 : vector<8x1xf32> to vector<8x128xf32>
    %158 = arith.mulf %155, %157 : vector<8x128xf32>
    %159 = vector.extract_strided_slice %136 {offsets = [8, 0], sizes = [8, 1], strides = [1, 1]} : vector<24x1xf32> to vector<8x1xf32>
    %160 = vector.broadcast %159 : vector<8x1xf32> to vector<8x128xf32>
    %161 = arith.addf %158, %160 : vector<8x128xf32>
    %162 = arith.negf %161 : vector<8x128xf32>
    %163 = math.exp %162 : vector<8x128xf32>
    %cst_43 = arith.constant 1.000000e+00 : f32
    %164 = vector.broadcast %cst_43 : f32 to vector<8x128xf32>
    %165 = arith.addf %164, %163 : vector<8x128xf32>
    %166 = arith.divf %164, %165 : vector<8x128xf32>
    %167 = arith.mulf %161, %166 : vector<8x128xf32>
    %168 = vector.extract_strided_slice %134 {offsets = [16, 0], sizes = [8, 8], strides = [1, 1]} : vector<24x8xbf16> to vector<8x8xbf16>
    %169 = vector.extract_strided_slice %133 {offsets = [8, 0], sizes = [8, 128], strides = [1, 1]} : vector<16x128xf32> to vector<8x128xf32>
    %170 = arith.truncf %169 : vector<8x128xf32> to vector<8x128xbf16>
    %cst_44 = arith.constant dense<0.000000e+00> : vector<8x128xf32>
    %171 = tpu.matmul %168, %170, %cst_44 {dimension_numbers = #tpu.dot_dimension_numbers<[1], [0], [0], [1], [0, 0, 1, 1], [], []>} : vector<8x8xbf16>, vector<8x128xbf16>, vector<8x128xf32> -> vector<8x128xf32>
    %172 = vector.extract_strided_slice %135 {offsets = [16, 0], sizes = [8, 1], strides = [1, 1]} : vector<24x1xf32> to vector<8x1xf32>
    %173 = vector.broadcast %172 : vector<8x1xf32> to vector<8x128xf32>
    %174 = arith.mulf %171, %173 : vector<8x128xf32>
    %175 = vector.extract_strided_slice %136 {offsets = [16, 0], sizes = [8, 1], strides = [1, 1]} : vector<24x1xf32> to vector<8x1xf32>
    %176 = vector.broadcast %175 : vector<8x1xf32> to vector<8x128xf32>
    %177 = arith.addf %174, %176 : vector<8x128xf32>
    %178 = arith.negf %177 : vector<8x128xf32>
    %179 = math.exp %178 : vector<8x128xf32>
    %cst_45 = arith.constant 1.000000e+00 : f32
    %180 = vector.broadcast %cst_45 : f32 to vector<8x128xf32>
    %181 = arith.addf %180, %179 : vector<8x128xf32>
    %182 = arith.divf %180, %181 : vector<8x128xf32>
    %183 = arith.mulf %177, %182 : vector<8x128xf32>
    %184 = vector.extract_strided_slice %151 {offsets = [0, 0], sizes = [8, 64], strides = [1, 1]} : vector<8x128xf32> to vector<8x64xf32>
    %185 = vector.extract_strided_slice %151 {offsets = [0, 64], sizes = [8, 64], strides = [1, 1]} : vector<8x128xf32> to vector<8x64xf32>
    %186 = tpu.concatenate %184, %185 in 0 : vector<8x64xf32>, vector<8x64xf32> -> vector<16x64xf32>
    %187 = vector.extract_strided_slice %167 {offsets = [0, 0], sizes = [8, 64], strides = [1, 1]} : vector<8x128xf32> to vector<8x64xf32>
    %188 = vector.extract_strided_slice %167 {offsets = [0, 64], sizes = [8, 64], strides = [1, 1]} : vector<8x128xf32> to vector<8x64xf32>
    %189 = tpu.concatenate %187, %188 in 0 : vector<8x64xf32>, vector<8x64xf32> -> vector<16x64xf32>
    %190 = vector.extract_strided_slice %183 {offsets = [0, 0], sizes = [8, 64], strides = [1, 1]} : vector<8x128xf32> to vector<8x64xf32>
    %191 = vector.extract_strided_slice %183 {offsets = [0, 64], sizes = [8, 64], strides = [1, 1]} : vector<8x128xf32> to vector<8x64xf32>
    %192 = tpu.concatenate %190, %191 in 0 : vector<8x64xf32>, vector<8x64xf32> -> vector<16x64xf32>
    %193 = arith.truncf %186 : vector<16x64xf32> to vector<16x64xbf16>
    %c0_46 = arith.constant 0 : index
    %c0_47 = arith.constant 0 : index
    %194 = vector.load %arg9[%c0_46, %c0_47] : memref<64x64xbf16, #tpu.memory_space<vmem>>, vector<64x64xbf16>
    %cst_48 = arith.constant dense<0.000000e+00> : vector<16x64xf32>
    %195 = tpu.matmul %193, %194, %cst_48 {dimension_numbers = #tpu.dot_dimension_numbers<[1], [0], [0], [1], [0, 0, 1, 1], [], []>} : vector<16x64xbf16>, vector<64x64xbf16>, vector<16x64xf32> -> vector<16x64xf32>
    %c0_49 = arith.constant 0 : index
    %c0_50 = arith.constant 0 : index
    %196 = vector.load %arg12[%c0_49, %c0_50] : memref<1x64xf32, #tpu.memory_space<vmem>>, vector<1x64xf32>
    %197 = vector.broadcast %196 : vector<1x64xf32> to vector<16x64xf32>
    %198 = arith.addf %195, %197 : vector<16x64xf32>
    %199 = arith.truncf %189 : vector<16x64xf32> to vector<16x64xbf16>
    %c0_51 = arith.constant 0 : index
    %c0_52 = arith.constant 0 : index
    %200 = vector.load %arg10[%c0_51, %c0_52] : memref<64x64xbf16, #tpu.memory_space<vmem>>, vector<64x64xbf16>
    %cst_53 = arith.constant dense<0.000000e+00> : vector<16x64xf32>
    %201 = tpu.matmul %199, %200, %cst_53 {dimension_numbers = #tpu.dot_dimension_numbers<[1], [0], [0], [1], [0, 0, 1, 1], [], []>} : vector<16x64xbf16>, vector<64x64xbf16>, vector<16x64xf32> -> vector<16x64xf32>
    %c0_54 = arith.constant 0 : index
    %c0_55 = arith.constant 0 : index
    %202 = vector.load %arg13[%c0_54, %c0_55] : memref<1x64xf32, #tpu.memory_space<vmem>>, vector<1x64xf32>
    %203 = vector.broadcast %202 : vector<1x64xf32> to vector<16x64xf32>
    %204 = arith.addf %201, %203 : vector<16x64xf32>
    %205 = arith.truncf %192 : vector<16x64xf32> to vector<16x64xbf16>
    %c0_56 = arith.constant 0 : index
    %c0_57 = arith.constant 0 : index
    %206 = vector.load %arg11[%c0_56, %c0_57] : memref<64x64xbf16, #tpu.memory_space<vmem>>, vector<64x64xbf16>
    %cst_58 = arith.constant dense<0.000000e+00> : vector<16x64xf32>
    %207 = tpu.matmul %205, %206, %cst_58 {dimension_numbers = #tpu.dot_dimension_numbers<[1], [0], [0], [1], [0, 0, 1, 1], [], []>} : vector<16x64xbf16>, vector<64x64xbf16>, vector<16x64xf32> -> vector<16x64xf32>
    %c0_59 = arith.constant 0 : index
    %c0_60 = arith.constant 0 : index
    %208 = vector.load %arg14[%c0_59, %c0_60] : memref<1x64xf32, #tpu.memory_space<vmem>>, vector<1x64xf32>
    %209 = vector.broadcast %208 : vector<1x64xf32> to vector<16x64xf32>
    %210 = arith.addf %207, %209 : vector<16x64xf32>
    %c0_61 = arith.constant 0 : index
    %c0_62 = arith.constant 0 : index
    %211 = vector.load %arg21[%c0_61, %c0_62] : memref<64x8xbf16, #tpu.memory_space<vmem>>, vector<64x8xbf16>
    %c0_63 = arith.constant 0 : index
    %c0_64 = arith.constant 0 : index
    %212 = vector.load %arg22[%c0_63, %c0_64] : memref<8x64xbf16, #tpu.memory_space<vmem>>, vector<8x64xbf16>
    %213 = vector.shape_cast %198 : vector<16x64xf32> to vector<2x1x8x64xf32>
    %214 = vector.shape_cast %204 : vector<16x64xf32> to vector<1x2x8x64xf32>
    %215 = vector.broadcast %213 : vector<2x1x8x64xf32> to vector<2x2x8x64xf32>
    %216 = vector.broadcast %214 : vector<1x2x8x64xf32> to vector<2x2x8x64xf32>
    %217 = arith.mulf %215, %216 : vector<2x2x8x64xf32>
    %218 = vector.shape_cast %217 : vector<2x2x8x64xf32> to vector<32x64xf32>
    %219 = arith.truncf %218 : vector<32x64xf32> to vector<32x64xbf16>
    %cst_65 = arith.constant dense<0.000000e+00> : vector<32x8xf32>
    %220 = tpu.matmul %219, %211, %cst_65 {dimension_numbers = #tpu.dot_dimension_numbers<[1], [0], [0], [1], [0, 0, 1, 1], [], []>} : vector<32x64xbf16>, vector<64x8xbf16>, vector<32x8xf32> -> vector<32x8xf32>
    %cst_66 = arith.constant 0.353553385 : f32
    %221 = vector.broadcast %cst_66 : f32 to vector<32x8xf32>
    %222 = arith.mulf %220, %221 : vector<32x8xf32>
    %223 = vector.shape_cast %222 : vector<32x8xf32> to vector<2x2x8x8xf32>
    %cst_67 = arith.constant dense<0xFF800000> : vector<2x8x8xf32>
    %224 = vector.multi_reduction <maximumf>, %223, %cst_67 [1] : vector<2x2x8x8xf32> to vector<2x8x8xf32>
    %225 = vector.shape_cast %224 : vector<2x8x8xf32> to vector<2x1x8x8xf32>
    %226 = vector.broadcast %225 : vector<2x1x8x8xf32> to vector<2x2x8x8xf32>
    %227 = arith.subf %223, %226 : vector<2x2x8x8xf32>
    %228 = math.exp %227 : vector<2x2x8x8xf32>
    %cst_68 = arith.constant dense<0.000000e+00> : vector<2x8x8xf32>
    %229 = vector.multi_reduction <add>, %228, %cst_68 [1] : vector<2x2x8x8xf32> to vector<2x8x8xf32>
    %230 = vector.shape_cast %229 : vector<2x8x8xf32> to vector<2x1x8x8xf32>
    %231 = tpu.reciprocal %230 {approx = true} : vector<2x1x8x8xf32> -> vector<2x1x8x8xf32>
    %232 = vector.broadcast %231 : vector<2x1x8x8xf32> to vector<2x2x8x8xf32>
    %233 = arith.mulf %228, %232 : vector<2x2x8x8xf32>
    %234 = vector.shape_cast %233 : vector<2x2x8x8xf32> to vector<32x8xf32>
    %235 = arith.truncf %234 : vector<32x8xf32> to vector<32x8xbf16>
    %cst_69 = arith.constant dense<0.000000e+00> : vector<32x64xf32>
    %236 = tpu.matmul %235, %212, %cst_69 {dimension_numbers = #tpu.dot_dimension_numbers<[1], [0], [0], [1], [0, 0, 1, 1], [], []>} : vector<32x8xbf16>, vector<8x64xbf16>, vector<32x64xf32> -> vector<32x64xf32>
    %237 = vector.shape_cast %236 : vector<32x64xf32> to vector<2x2x8x64xf32>
    %238 = vector.shape_cast %210 : vector<16x64xf32> to vector<1x2x8x64xf32>
    %239 = vector.broadcast %238 : vector<1x2x8x64xf32> to vector<2x2x8x64xf32>
    %240 = arith.mulf %237, %239 : vector<2x2x8x64xf32>
    %cst_70 = arith.constant dense<0.000000e+00> : vector<2x8x64xf32>
    %241 = vector.multi_reduction <add>, %240, %cst_70 [1] : vector<2x2x8x64xf32> to vector<2x8x64xf32>
    %242 = vector.shape_cast %241 : vector<2x8x64xf32> to vector<16x64xf32>
    %c0_71 = arith.constant 0 : index
    %c0_72 = arith.constant 0 : index
    %243 = vector.load %arg19[%c0_71, %c0_72] : memref<1x64xf32, #tpu.memory_space<vmem>>, vector<1x64xf32>
    %c0_73 = arith.constant 0 : index
    %c0_74 = arith.constant 0 : index
    %244 = vector.load %arg20[%c0_73, %c0_74] : memref<1x64xf32, #tpu.memory_space<vmem>>, vector<1x64xf32>
    %245 = arith.truncf %242 : vector<16x64xf32> to vector<16x64xbf16>
    %c0_75 = arith.constant 0 : index
    %c0_76 = arith.constant 0 : index
    %246 = vector.load %arg15[%c0_75, %c0_76] : memref<64x64xbf16, #tpu.memory_space<vmem>>, vector<64x64xbf16>
    %cst_77 = arith.constant dense<0.000000e+00> : vector<16x64xf32>
    %247 = tpu.matmul %245, %246, %cst_77 {dimension_numbers = #tpu.dot_dimension_numbers<[1], [0], [0], [1], [0, 0, 1, 1], [], []>} : vector<16x64xbf16>, vector<64x64xbf16>, vector<16x64xf32> -> vector<16x64xf32>
    %c0_78 = arith.constant 0 : index
    %c0_79 = arith.constant 0 : index
    %248 = vector.load %arg16[%c0_78, %c0_79] : memref<1x64xf32, #tpu.memory_space<vmem>>, vector<1x64xf32>
    %249 = vector.broadcast %248 : vector<1x64xf32> to vector<16x64xf32>
    %250 = arith.addf %247, %249 : vector<16x64xf32>
    %251 = arith.addf %250, %186 : vector<16x64xf32>
    %cst_80 = arith.constant dense<0.000000e+00> : vector<16xf32>
    %252 = vector.multi_reduction <add>, %251, %cst_80 [1] : vector<16x64xf32> to vector<16xf32>
    %253 = vector.shape_cast %252 : vector<16xf32> to vector<16x1xf32>
    %cst_81 = arith.constant 6.400000e+01 : f32
    %254 = vector.broadcast %cst_81 : f32 to vector<16x1xf32>
    %255 = arith.divf %253, %254 : vector<16x1xf32>
    %256 = vector.broadcast %255 : vector<16x1xf32> to vector<16x64xf32>
    %257 = arith.subf %251, %256 : vector<16x64xf32>
    %258 = arith.mulf %257, %257 : vector<16x64xf32>
    %cst_82 = arith.constant dense<0.000000e+00> : vector<16xf32>
    %259 = vector.multi_reduction <add>, %258, %cst_82 [1] : vector<16x64xf32> to vector<16xf32>
    %260 = vector.shape_cast %259 : vector<16xf32> to vector<16x1xf32>
    %cst_83 = arith.constant 6.400000e+01 : f32
    %261 = vector.broadcast %cst_83 : f32 to vector<16x1xf32>
    %262 = arith.divf %260, %261 : vector<16x1xf32>
    %cst_84 = arith.constant 9.99999974E-6 : f32
    %263 = vector.broadcast %cst_84 : f32 to vector<16x1xf32>
    %264 = arith.addf %262, %263 : vector<16x1xf32>
    %265 = math.rsqrt %264 : vector<16x1xf32>
    %266 = vector.broadcast %265 : vector<16x1xf32> to vector<16x64xf32>
    %267 = arith.mulf %257, %266 : vector<16x64xf32>
    %268 = vector.broadcast %243 : vector<1x64xf32> to vector<16x64xf32>
    %269 = arith.mulf %267, %268 : vector<16x64xf32>
    %270 = vector.broadcast %244 : vector<1x64xf32> to vector<16x64xf32>
    %271 = arith.addf %269, %270 : vector<16x64xf32>
    %272 = arith.truncf %271 : vector<16x64xf32> to vector<16x64xbf16>
    %c0_85 = arith.constant 0 : index
    %c0_86 = arith.constant 0 : index
    %273 = vector.load %arg17[%c0_85, %c0_86] : memref<64x64xbf16, #tpu.memory_space<vmem>>, vector<64x64xbf16>
    %cst_87 = arith.constant dense<0.000000e+00> : vector<16x64xf32>
    %274 = tpu.matmul %272, %273, %cst_87 {dimension_numbers = #tpu.dot_dimension_numbers<[1], [0], [0], [1], [0, 0, 1, 1], [], []>} : vector<16x64xbf16>, vector<64x64xbf16>, vector<16x64xf32> -> vector<16x64xf32>
    %c0_88 = arith.constant 0 : index
    %c0_89 = arith.constant 0 : index
    %275 = vector.load %arg18[%c0_88, %c0_89] : memref<1x64xf32, #tpu.memory_space<vmem>>, vector<1x64xf32>
    %276 = vector.broadcast %275 : vector<1x64xf32> to vector<16x64xf32>
    %277 = arith.addf %274, %276 : vector<16x64xf32>
    %278 = arith.addf %271, %277 : vector<16x64xf32>
    %cst_90 = arith.constant dense<0.000000e+00> : vector<16xf32>
    %279 = vector.multi_reduction <add>, %278, %cst_90 [1] : vector<16x64xf32> to vector<16xf32>
    %280 = vector.shape_cast %279 : vector<16xf32> to vector<16x1xf32>
    %cst_91 = arith.constant 6.400000e+01 : f32
    %281 = vector.broadcast %cst_91 : f32 to vector<16x1xf32>
    %282 = arith.divf %280, %281 : vector<16x1xf32>
    %283 = vector.broadcast %282 : vector<16x1xf32> to vector<16x64xf32>
    %284 = arith.subf %278, %283 : vector<16x64xf32>
    %285 = arith.mulf %284, %284 : vector<16x64xf32>
    %cst_92 = arith.constant dense<0.000000e+00> : vector<16xf32>
    %286 = vector.multi_reduction <add>, %285, %cst_92 [1] : vector<16x64xf32> to vector<16xf32>
    %287 = vector.shape_cast %286 : vector<16xf32> to vector<16x1xf32>
    %cst_93 = arith.constant 6.400000e+01 : f32
    %288 = vector.broadcast %cst_93 : f32 to vector<16x1xf32>
    %289 = arith.divf %287, %288 : vector<16x1xf32>
    %cst_94 = arith.constant 9.99999974E-6 : f32
    %290 = vector.broadcast %cst_94 : f32 to vector<16x1xf32>
    %291 = arith.addf %289, %290 : vector<16x1xf32>
    %292 = math.rsqrt %291 : vector<16x1xf32>
    %293 = vector.broadcast %292 : vector<16x1xf32> to vector<16x64xf32>
    %294 = arith.mulf %284, %293 : vector<16x64xf32>
    %295 = vector.broadcast %243 : vector<1x64xf32> to vector<16x64xf32>
    %296 = arith.mulf %294, %295 : vector<16x64xf32>
    %297 = vector.broadcast %244 : vector<1x64xf32> to vector<16x64xf32>
    %298 = arith.addf %296, %297 : vector<16x64xf32>
    %c0_95 = arith.constant 0 : index
    %c0_96 = arith.constant 0 : index
    %299 = vector.load %arg23[%c0_95, %c0_96] : memref<16x64xf32, #tpu.memory_space<vmem>>, vector<16x64xf32>
    tpu.vector_store %arg23[%c0_95, %c0_96], %298 {strides = array<i32>} : memref<16x64xf32, #tpu.memory_space<vmem>>, vector<16x64xf32>,
    return
  }
  func.func @transform_0(%arg0: i32) -> (i32, i32) {
    %c0_i32 = arith.constant 0 : i32
    %c0_i32_0 = arith.constant 0 : i32
    %c0_i32_1 = arith.constant 0 : i32
    return %c0_i32, %c0_i32_0 : i32, i32
  }
  func.func @transform_1(%arg0: i32) -> (i32, i32) {
    %c0_i32 = arith.constant 0 : i32
    %c0_i32_0 = arith.constant 0 : i32
    %c0_i32_1 = arith.constant 0 : i32
    return %c0_i32, %c0_i32_0 : i32, i32
  }
  func.func @transform_2(%arg0: i32) -> (i32, i32) {
    %c0_i32 = arith.constant 0 : i32
    %c0_i32_0 = arith.constant 0 : i32
    %c0_i32_1 = arith.constant 0 : i32
    return %c0_i32, %c0_i32_0 : i32, i32
  }
  func.func @transform_3(%arg0: i32) -> (i32, i32) {
    %c0_i32 = arith.constant 0 : i32
    %c0_i32_0 = arith.constant 0 : i32
    %c0_i32_1 = arith.constant 0 : i32
    return %c0_i32, %c0_i32_0 : i32, i32
  }
  func.func @transform_4(%arg0: i32) -> (i32, i32) {
    %c0_i32 = arith.constant 0 : i32
    %c0_i32_0 = arith.constant 0 : i32
    %c0_i32_1 = arith.constant 0 : i32
    return %c0_i32, %c0_i32_0 : i32, i32
  }
  func.func @transform_5(%arg0: i32) -> (i32, i32) {
    %c0_i32 = arith.constant 0 : i32
    %c0_i32_0 = arith.constant 0 : i32
    %c0_i32_1 = arith.constant 0 : i32
    return %c0_i32, %c0_i32_0 : i32, i32
  }
  func.func @transform_6(%arg0: i32) -> (i32, i32) {
    %c0_i32 = arith.constant 0 : i32
    %c0_i32_0 = arith.constant 0 : i32
    %c0_i32_1 = arith.constant 0 : i32
    return %c0_i32, %c0_i32_0 : i32, i32
  }
  func.func @transform_7(%arg0: i32) -> (i32, i32) {
    %c0_i32 = arith.constant 0 : i32
    %c0_i32_0 = arith.constant 0 : i32
    %c0_i32_1 = arith.constant 0 : i32
    return %c0_i32, %c0_i32_0 : i32, i32
  }
  func.func @transform_8(%arg0: i32) -> (i32, i32) {
    %c0_i32 = arith.constant 0 : i32
    %c0_i32_0 = arith.constant 0 : i32
    %c0_i32_1 = arith.constant 0 : i32
    return %c0_i32, %c0_i32_0 : i32, i32
  }
  func.func @transform_9(%arg0: i32) -> (i32, i32) {
    %c0_i32 = arith.constant 0 : i32
    %c0_i32_0 = arith.constant 0 : i32
    %c0_i32_1 = arith.constant 0 : i32
    return %c0_i32, %c0_i32_0 : i32, i32
  }
  func.func @transform_10(%arg0: i32) -> (i32, i32) {
    %c0_i32 = arith.constant 0 : i32
    %c0_i32_0 = arith.constant 0 : i32
    %c0_i32_1 = arith.constant 0 : i32
    return %c0_i32, %c0_i32_0 : i32, i32
  }
  func.func @transform_11(%arg0: i32) -> (i32, i32) {
    %c0_i32 = arith.constant 0 : i32
    %c0_i32_0 = arith.constant 0 : i32
    %c0_i32_1 = arith.constant 0 : i32
    return %c0_i32, %c0_i32_0 : i32, i32
  }
  func.func @transform_12(%arg0: i32) -> (i32, i32) {
    %c0_i32 = arith.constant 0 : i32
    %c0_i32_0 = arith.constant 0 : i32
    %c0_i32_1 = arith.constant 0 : i32
    return %c0_i32, %c0_i32_0 : i32, i32
  }
  func.func @transform_13(%arg0: i32) -> (i32, i32) {
    %c0_i32 = arith.constant 0 : i32
    %c0_i32_0 = arith.constant 0 : i32
    %c0_i32_1 = arith.constant 0 : i32
    return %c0_i32, %c0_i32_0 : i32, i32
  }
  func.func @transform_14(%arg0: i32) -> (i32, i32) {
    %c0_i32 = arith.constant 0 : i32
    %c0_i32_0 = arith.constant 0 : i32
    %c0_i32_1 = arith.constant 0 : i32
    return %c0_i32, %c0_i32_0 : i32, i32
  }
  func.func @transform_15(%arg0: i32) -> (i32, i32) {
    %c0_i32 = arith.constant 0 : i32
    %c0_i32_0 = arith.constant 0 : i32
    %c0_i32_1 = arith.constant 0 : i32
    return %c0_i32, %c0_i32_0 : i32, i32
  }
  func.func @transform_16(%arg0: i32) -> (i32, i32) {
    %c0_i32 = arith.constant 0 : i32
    %c0_i32_0 = arith.constant 0 : i32
    %c0_i32_1 = arith.constant 0 : i32
    return %c0_i32, %c0_i32_0 : i32, i32
  }
  func.func @transform_17(%arg0: i32) -> (i32, i32) {
    %c0_i32 = arith.constant 0 : i32
    %c0_i32_0 = arith.constant 0 : i32
    %c0_i32_1 = arith.constant 0 : i32
    return %c0_i32, %c0_i32_0 : i32, i32
  }
  func.func @transform_18(%arg0: i32) -> (i32, i32) {
    %c0_i32 = arith.constant 0 : i32
    %c0_i32_0 = arith.constant 0 : i32
    %c0_i32_1 = arith.constant 0 : i32
    return %c0_i32, %c0_i32_0 : i32, i32
  }
  func.func @transform_19(%arg0: i32) -> (i32, i32) {
    %c0_i32 = arith.constant 0 : i32
    %c0_i32_0 = arith.constant 0 : i32
    %c0_i32_1 = arith.constant 0 : i32
    return %c0_i32, %c0_i32_0 : i32, i32
  }
  func.func @transform_20(%arg0: i32) -> (i32, i32) {
    %c0_i32 = arith.constant 0 : i32
    %c0_i32_0 = arith.constant 0 : i32
    %c0_i32_1 = arith.constant 0 : i32
    return %c0_i32, %c0_i32_0 : i32, i32
  }
  func.func @transform_21(%arg0: i32) -> (i32, i32) {
    %c0_i32 = arith.constant 0 : i32
    %c0_i32_0 = arith.constant 0 : i32
    %c0_i32_1 = arith.constant 0 : i32
    return %c0_i32, %c0_i32_0 : i32, i32
  }
  func.func @transform_22(%arg0: i32) -> (i32, i32) {
    %c0_i32 = arith.constant 0 : i32
    %c0_i32_0 = arith.constant 0 : i32
    %c0_i32_1 = arith.constant 0 : i32
    return %c0_i32, %c0_i32_0 : i32, i32
  }
}

</mosaic_0001>

<llo_original>
// kernel: msa_forward.1
$region0: #{msa_forward.1}
  #allocation0 [shape = 'u32[]', space=smem, size = 0x4, offset = 0x4, fixed_abs, tag = 'smem constant byte address 0x4 - core index']
  #allocation1 [shape = 'u32[144,128]{1,0:T(1,128)}', space=vmem, size = 0x12000, scoped, tag = 'internal scratch']
  %s0 = inlined_call_operand.vmem [shape: bf16[32,128], index: 0, kind: input, shape index: {}]
  %s1 = inlined_call_operand.vmem [shape: bf16[32,128], index: 1, kind: input, shape index: {}]
  %s2 = inlined_call_operand.vmem [shape: bf16[24,72], index: 2, kind: input, shape index: {}]
  %s3 = inlined_call_operand.vmem [shape: f32[24,1], index: 3, kind: input, shape index: {}]
  %s4 = inlined_call_operand.vmem [shape: f32[24,1], index: 4, kind: input, shape index: {}]
  %s5 = inlined_call_operand.vmem [shape: bf16[24,8], index: 5, kind: input, shape index: {}]
  %s6 = inlined_call_operand.vmem [shape: f32[24,1], index: 6, kind: input, shape index: {}]
  %s7 = inlined_call_operand.vmem [shape: f32[24,1], index: 7, kind: input, shape index: {}]
  %s8 = inlined_call_operand.vmem [shape: bf16[64,64], index: 8, kind: input, shape index: {}]
  %s9 = inlined_call_operand.vmem [shape: bf16[64,64], index: 9, kind: input, shape index: {}]
  %s10 = inlined_call_operand.vmem [shape: bf16[64,64], index: 10, kind: input, shape index: {}]
  %s11 = inlined_call_operand.vmem [shape: f32[1,64], index: 11, kind: input, shape index: {}]
  %s12 = inlined_call_operand.vmem [shape: f32[1,64], index: 12, kind: input, shape index: {}]
  %s13 = inlined_call_operand.vmem [shape: f32[1,64], index: 13, kind: input, shape index: {}]
  %s14 = inlined_call_operand.vmem [shape: bf16[64,64], index: 14, kind: input, shape index: {}]
  %s15 = inlined_call_operand.vmem [shape: f32[1,64], index: 15, kind: input, shape index: {}]
  %s16 = inlined_call_operand.vmem [shape: bf16[64,64], index: 16, kind: input, shape index: {}]
  %s17 = inlined_call_operand.vmem [shape: f32[1,64], index: 17, kind: input, shape index: {}]
  %s18 = inlined_call_operand.vmem [shape: f32[1,64], index: 18, kind: input, shape index: {}]
  %s19 = inlined_call_operand.vmem [shape: f32[1,64], index: 19, kind: input, shape index: {}]
  %s20 = inlined_call_operand.vmem [shape: bf16[64,8], index: 20, kind: input, shape index: {}]
  %s21 = inlined_call_operand.vmem [shape: bf16[8,64], index: 21, kind: input, shape index: {}]
  %s22 = inlined_call_operand.vmem [shape: f32[16,64], index: 22, kind: output, shape index: {}]
  %s23 = sld [smem:[#allocation0]]
  $region98: #{msa_forward.1} parent=0
    _
  %s25 = ssub.s32 1, %s23
  %s26 = scalar_select 0, %s25, %s23
  // Predicated region
  $region2: #{msa_forward.1} parent=0 // pred_check
    _
  $region3: #{msa_forward.1} parent=0 // pred_check_branch
    %28 = sbr.rel (0) target = $region5
  $region4: #{msa_forward.1} parent=0 // pred_region
    _
  $region5: #{msa_forward.1} parent=0 // pred_fallthru
    _
  // Predicated region
  $region6: #{msa_forward.1} parent=0 // pred_check
    _
  $region7: #{msa_forward.1} parent=0 // pred_check_branch
    %30 = sbr.rel (0) target = $region9
  $region8: #{msa_forward.1} parent=0 // pred_region
    _
  $region9: #{msa_forward.1} parent=0 // pred_fallthru
    _
  // Predicated region
  $region10: #{msa_forward.1} parent=0 // pred_check
    _
  $region11: #{msa_forward.1} parent=0 // pred_check_branch
    %32 = sbr.rel (0) target = $region13
  $region12: #{msa_forward.1} parent=0 // pred_region
    _
  $region13: #{msa_forward.1} parent=0 // pred_fallthru
    _
  // Predicated region
  $region14: #{msa_forward.1} parent=0 // pred_check
    _
  $region15: #{msa_forward.1} parent=0 // pred_check_branch
    %34 = sbr.rel (0) target = $region17
  $region16: #{msa_forward.1} parent=0 // pred_region
    _
  $region17: #{msa_forward.1} parent=0 // pred_fallthru
    _
  // Predicated region
  $region18: #{msa_forward.1} parent=0 // pred_check
    _
  $region19: #{msa_forward.1} parent=0 // pred_check_branch
    %36 = sbr.rel (0) target = $region21
  $region20: #{msa_forward.1} parent=0 // pred_region
    _
  $region21: #{msa_forward.1} parent=0 // pred_fallthru
    _
  // Predicated region
  $region22: #{msa_forward.1} parent=0 // pred_check
    _
  $region23: #{msa_forward.1} parent=0 // pred_check_branch
    %38 = sbr.rel (0) target = $region25
  $region24: #{msa_forward.1} parent=0 // pred_region
    _
  $region25: #{msa_forward.1} parent=0 // pred_fallthru
    _
  // Predicated region
  $region26: #{msa_forward.1} parent=0 // pred_check
    _
  $region27: #{msa_forward.1} parent=0 // pred_check_branch
    %40 = sbr.rel (0) target = $region29
  $region28: #{msa_forward.1} parent=0 // pred_region
    _
  $region29: #{msa_forward.1} parent=0 // pred_fallthru
    _
  // Predicated region
  $region30: #{msa_forward.1} parent=0 // pred_check
    _
  $region31: #{msa_forward.1} parent=0 // pred_check_branch
    %42 = sbr.rel (0) target = $region33
  $region32: #{msa_forward.1} parent=0 // pred_region
    _
  $region33: #{msa_forward.1} parent=0 // pred_fallthru
    _
  // Predicated region
  $region34: #{msa_forward.1} parent=0 // pred_check
    _
  $region35: #{msa_forward.1} parent=0 // pred_check_branch
    %44 = sbr.rel (0) target = $region37
  $region36: #{msa_forward.1} parent=0 // pred_region
    _
  $region37: #{msa_forward.1} parent=0 // pred_fallthru
    _
  // Predicated region
  $region38: #{msa_forward.1} parent=0 // pred_check
    _
  $region39: #{msa_forward.1} parent=0 // pred_check_branch
    %46 = sbr.rel (0) target = $region41
  $region40: #{msa_forward.1} parent=0 // pred_region
    _
  $region41: #{msa_forward.1} parent=0 // pred_fallthru
    _
  // Predicated region
  $region42: #{msa_forward.1} parent=0 // pred_check
    _
  $region43: #{msa_forward.1} parent=0 // pred_check_branch
    %48 = sbr.rel (0) target = $region45
  $region44: #{msa_forward.1} parent=0 // pred_region
    _
  $region45: #{msa_forward.1} parent=0 // pred_fallthru
    _
  // Predicated region
  $region46: #{msa_forward.1} parent=0 // pred_check
    _
  $region47: #{msa_forward.1} parent=0 // pred_check_branch
    %50 = sbr.rel (0) target = $region49
  $region48: #{msa_forward.1} parent=0 // pred_region
    _
  $region49: #{msa_forward.1} parent=0 // pred_fallthru
    _
  // Predicated region
  $region50: #{msa_forward.1} parent=0 // pred_check
    _
  $region51: #{msa_forward.1} parent=0 // pred_check_branch
    %52 = sbr.rel (0) target = $region53
  $region52: #{msa_forward.1} parent=0 // pred_region
    _
  $region53: #{msa_forward.1} parent=0 // pred_fallthru
    _
  // Predicated region
  $region54: #{msa_forward.1} parent=0 // pred_check
    _
  $region55: #{msa_forward.1} parent=0 // pred_check_branch
    %54 = sbr.rel (0) target = $region57
  $region56: #{msa_forward.1} parent=0 // pred_region
    _
  $region57: #{msa_forward.1} parent=0 // pred_fallthru
    _
  // Predicated region
  $region58: #{msa_forward.1} parent=0 // pred_check
    _
  $region59: #{msa_forward.1} parent=0 // pred_check_branch
    %56 = sbr.rel (0) target = $region61
  $region60: #{msa_forward.1} parent=0 // pred_region
    _
  $region61: #{msa_forward.1} parent=0 // pred_fallthru
    _
  // Predicated region
  $region62: #{msa_forward.1} parent=0 // pred_check
    _
  $region63: #{msa_forward.1} parent=0 // pred_check_branch
    %58 = sbr.rel (0) target = $region65
  $region64: #{msa_forward.1} parent=0 // pred_region
    _
  $region65: #{msa_forward.1} parent=0 // pred_fallthru
    _
  // Predicated region
  $region66: #{msa_forward.1} parent=0 // pred_check
    _
  $region67: #{msa_forward.1} parent=0 // pred_check_branch
    %60 = sbr.rel (0) target = $region69
  $region68: #{msa_forward.1} parent=0 // pred_region
    _
  $region69: #{msa_forward.1} parent=0 // pred_fallthru
    _
  // Predicated region
  $region70: #{msa_forward.1} parent=0 // pred_check
    _
  $region71: #{msa_forward.1} parent=0 // pred_check_branch
    %62 = sbr.rel (0) target = $region73
  $region72: #{msa_forward.1} parent=0 // pred_region
    _
  $region73: #{msa_forward.1} parent=0 // pred_fallthru
    _
  // Predicated region
  $region74: #{msa_forward.1} parent=0 // pred_check
    _
  $region75: #{msa_forward.1} parent=0 // pred_check_branch
    %64 = sbr.rel (0) target = $region77
  $region76: #{msa_forward.1} parent=0 // pred_region
    _
  $region77: #{msa_forward.1} parent=0 // pred_fallthru
    _
  // Predicated region
  $region78: #{msa_forward.1} parent=0 // pred_check
    _
  $region79: #{msa_forward.1} parent=0 // pred_check_branch
    %66 = sbr.rel (0) target = $region81
  $region80: #{msa_forward.1} parent=0 // pred_region
    _
  $region81: #{msa_forward.1} parent=0 // pred_fallthru
    _
  // Predicated region
  $region82: #{msa_forward.1} parent=0 // pred_check
    _
  $region83: #{msa_forward.1} parent=0 // pred_check_branch
    %68 = sbr.rel (0) target = $region85
  $region84: #{msa_forward.1} parent=0 // pred_region
    _
  $region85: #{msa_forward.1} parent=0 // pred_fallthru
    _
  // Predicated region
  $region86: #{msa_forward.1} parent=0 // pred_check
    _
  $region87: #{msa_forward.1} parent=0 // pred_check_branch
    %70 = sbr.rel (0) target = $region89
  $region88: #{msa_forward.1} parent=0 // pred_region
    _
  $region89: #{msa_forward.1} parent=0 // pred_fallthru
    _
  %v72 = vlaneseq
  %v73 = vand.u32 %v72, 127
  %vm74 = vcmp.lt.s32.totalorder %v73, 0
  %v75 = vsub.s32 0, %v73
  %v76 = vsel %vm74, %v75, %v73
  %v77 = vshrl.u32 %v76, 6
  %v78 = vand.u32 %v76, 63
  %v79 = vsub.s32 0, %v78
  %v80 = vsel %vm74, %v79, %v78
  %vm81 = vcmp.ne.s32.totalorder %v80, 0
  %vm82 = vcmp.lt.s32.totalorder %v80, 0
  %vm83 = vmand %vm82, %vm81
  %v84 = vadd.s32 %v80, 64
  %v85 = vsel %vm83, %v84, %v80
  %vm86 = vcmp.lt.s32.totalorder %v85, 8
  %vm87 = vcmp.lt.s32.totalorder %v73, 0
  %v88 = vsub.s32 0, %v73
  %v89 = vsel %vm87, %v88, %v73
  %v90 = vshrl.u32 %v89, 3
  %v91 = vand.u32 %v89, 7
  %v92 = vsub.s32 0, %v91
  %v93 = vsel %vm87, %v92, %v91
  %vm94 = vcmp.ne.s32.totalorder %v93, 0
  %vm95 = vcmp.lt.s32.totalorder %v93, 0
  %vm96 = vmand %vm95, %vm94
  %v97 = vadd.s32 %v93, 8
  %v98 = vsel %vm96, %v97, %v93
  %vm99 = vcmp.eq.s32.totalorder %v98, 0
  %v100 = vld [vmem:[%s0] sm:$0xf]
  %v101 = vld [vmem:[%s0 + $0x4] sm:$0xf]
  %v102 = vld [vmem:[%s0 + $0x8] sm:$0xf]
  %v103 = vld [vmem:[%s0 + $0xc] sm:$0xf]
  %v105 = vunpack.c.l.b16 %v103
  %v106 = vpack.c.b16 %v105, %v105
  %107 = vrot.lane.b32.xlu0 %v106, 9
  %v108 = vpop.permute.xlu0 %107
  %vm109 = vcmask 72704
  %v112 = vsel %vm109, 0, %v108
  %vm114 = vmpackc.low %vm86, %vm86
  %v115 = vsel %vm114, 0, %v112
  %vm116 = vmpackc.low %vm99, %vm99
  %v117 = vsel %vm116, 0, %v115
  %v119 = vunpack.c.l.b16 %v102
  %v120 = vpack.c.b16 %v119, %v119
  %121 = vrot.lane.b32.xlu0 %v120, 8
  %v122 = vpop.permute.xlu0 %121
  %vm123 = vcmask 64512
  %v125 = vsel %vm123, 0, %v122
  %v127 = vsel %vm114, 0, %v125
  %128 = vrot.lane.b32.xlu0 %v106, 8
  %v129 = vpop.permute.xlu0 %128
  %v131 = vsel %vm123, 0, %v129
  %v133 = vsel %vm114, 0, %v131
  %v135 = vunpack.c.l.b16 %v101
  %v136 = vpack.c.b16 %v135, %v135
  %137 = vrot.lane.b32.xlu0 %v136, 1
  %v138 = vpop.permute.xlu0 %137
  %vm139 = vcmask 7168
  %v141 = vsel %vm139, 0, %v138
  %v143 = vsel %vm116, 0, %v141
  %144 = vrot.lane.b32.xlu0 %v106, 1
  %v145 = vpop.permute.xlu0 %144
  %v147 = vsel %vm139, 0, %v145
  %v149 = vsel %vm116, 0, %v147
  %v151 = vrot.slane %v127, 4
  %v153 = vrot.slane %v143, 4
  %vm154 = vcmask 1043456
  %v157 = vsel %vm154, %v117, %v151
  %v161 = vsel %vm154, %v133, %v153
  %v165 = vsel %vm154, %v100, %v136
  %v169 = vsel %vm154, %v149, %v120
  %v171 = vld [vmem:[%s1] sm:$0xf]
  %v172 = vld [vmem:[%s1 + $0x4] sm:$0xf]
  %v173 = vld [vmem:[%s1 + $0x8] sm:$0xf]
  %v174 = vld [vmem:[%s1 + $0xc] sm:$0xf]
  %v176 = vunpack.c.l.b16 %v174
  %v177 = vpack.c.b16 %v176, %v176
  %178 = vrot.lane.b32.xlu0 %v177, 9
  %v179 = vpop.permute.xlu0 %178
  %v181 = vsel %vm109, 0, %v179
  %v183 = vsel %vm114, 0, %v181
  %v184 = vsel %vm116, 0, %v183
  %v186 = vunpack.c.l.b16 %v173
  %v187 = vpack.c.b16 %v186, %v186
  %188 = vrot.lane.b32.xlu0 %v187, 8
  %v189 = vpop.permute.xlu0 %188
  %v191 = vsel %vm123, 0, %v189
  %v193 = vsel %vm114, 0, %v191
  %194 = vrot.lane.b32.xlu0 %v177, 8
  %v195 = vpop.permute.xlu0 %194
  %v197 = vsel %vm123, 0, %v195
  %v199 = vsel %vm114, 0, %v197
  %v201 = vunpack.c.l.b16 %v172
  %v202 = vpack.c.b16 %v201, %v201
  %203 = vrot.lane.b32.xlu0 %v202, 1
  %v204 = vpop.permute.xlu0 %203
  %v206 = vsel %vm139, 0, %v204
  %v208 = vsel %vm116, 0, %v206
  %209 = vrot.lane.b32.xlu0 %v177, 1
  %v210 = vpop.permute.xlu0 %209
  %v212 = vsel %vm139, 0, %v210
  %v214 = vsel %vm116, 0, %v212
  %v216 = vrot.slane %v193, 4
  %v218 = vrot.slane %v208, 4
  %v221 = vsel %vm154, %v184, %v216
  %v225 = vsel %vm154, %v199, %v218
  %v229 = vsel %vm154, %v171, %v202
  %v233 = vsel %vm154, %v214, %v187
  %v235 = vld [vmem:[%s2] sm:$0xf]
  %v236 = vld [vmem:[%s2 + $0x4] sm:$0xf]
  %v237 = vld [vmem:[%s2 + $0x8] sm:$0xf]
  %v238 = vld [vmem:[%s3] sm:$0xff]
  %v239 = vld [vmem:[%s3 + $0x8] sm:$0xff]
  %v240 = vld [vmem:[%s3 + $0x10] sm:$0xff]
  %v241 = vld [vmem:[%s4] sm:$0xff]
  %v242 = vld [vmem:[%s4 + $0x8] sm:$0xff]
  %v243 = vld [vmem:[%s4 + $0x10] sm:$0xff]
  %vm244 = vcmask 588800
  %v246 = vsel %vm244, %v235, 0
  %v249 = vsel %vm154, %v103, 0
  %251 = vmatprep.subr.bf16.mxu0 0
  %252 = vmatpush1.bf16.msra.mxu0 0
  %253 = vmatprep.subr.bf16.mxu0 0
  %254 = vmatpush1.bf16.msra.mxu0 0
  %255 = vmatprep.subr.bf16.mxu0 0
  %256 = vmatpush1.bf16.msra.mxu0 0
  %257 = vmatprep.subr.bf16.mxu0 0
  %258 = vmatpush1.bf16.msra.mxu0 %v249
  %259 = vmatprep.subr.bf16.mxu0 0
  %260 = vmatpush1.bf16.msra.mxu0 %v169
  %261 = vmatprep.subr.bf16.mxu0 0
  %262 = vmatpush1.bf16.msra.mxu0 %v165
  %263 = vmatprep.subr.bf16.mxu0 0
  %264 = vmatpush1.bf16.msra.mxu0 %v161
  %265 = vmatprep.subr.bf16.mxu0 0
  %266 = vmatpush1.bf16.msra.mxu0 %v157
  %267 = vmatprep.subr.bf16.mxu0 0
  %268 = vmatpush2.bf16.msra.mxu0 0
  %269 = vmatprep.subr.bf16.mxu0 0
  %270 = vmatpush2.bf16.msra.mxu0 0
  %271 = vmatprep.subr.bf16.mxu0 0
  %272 = vmatpush2.bf16.msra.mxu0 0
  %273 = vmatprep.subr.bf16.mxu0 0
  %274 = vmatpush2.bf16.msra.mxu0 0
  %275 = vmatprep.subr.bf16.mxu0 0
  %276 = vmatpush2.bf16.msra.mxu0 0
  %277 = vmatprep.subr.bf16.mxu0 0
  %278 = vmatpush2.bf16.msra.mxu0 0
  %279 = vmatprep.subr.bf16.mxu0 0
  %280 = vmatpush2.bf16.msra.mxu0 0
  %281 = vmatprep.subr.bf16.mxu0 0
  %282 = vmatpush2.bf16.msra.mxu0 0
  %283 = vmatprep.mubr.bf16.mxu0 0
  %284 = vmatmul.mubr.bf16.gmra.mxu0 %v246
  %v285 = vpop.f32.mrf.mxu0
  %v286 = vadd.f32 0.0, %v285
  %v287 = vpop.f32.mrf.mxu0
  %v288 = vpop.f32.mrf.mxu0
  %v289 = vpop.f32.mrf.mxu0
  %290 = vdwg.mxu0
  %v293 = vunpack.c.l.b16 %v236
  %v294 = vunpack.c.l.b16 %v237
  %v295 = vpack.c.b16 %v294, %v293
  %v297 = vsel %vm244, %v295, 0
  %v300 = vsel %vm154, %v174, 0
  %302 = vmatprep.subr.bf16.mxu0 0
  %303 = vmatpush1.bf16.msra.mxu0 0
  %304 = vmatprep.subr.bf16.mxu0 0
  %305 = vmatpush1.bf16.msra.mxu0 0
  %306 = vmatprep.subr.bf16.mxu0 0
  %307 = vmatpush1.bf16.msra.mxu0 0
  %308 = vmatprep.subr.bf16.mxu0 0
  %309 = vmatpush1.bf16.msra.mxu0 %v300
  %310 = vmatprep.subr.bf16.mxu0 0
  %311 = vmatpush1.bf16.msra.mxu0 %v233
  %312 = vmatprep.subr.bf16.mxu0 0
  %313 = vmatpush1.bf16.msra.mxu0 %v229
  %314 = vmatprep.subr.bf16.mxu0 0
  %315 = vmatpush1.bf16.msra.mxu0 %v225
  %316 = vmatprep.subr.bf16.mxu0 0
  %317 = vmatpush1.bf16.msra.mxu0 %v221
  %318 = vmatprep.subr.bf16.mxu0 0
  %319 = vmatpush2.bf16.msra.mxu0 0
  %320 = vmatprep.subr.bf16.mxu0 0
  %321 = vmatpush2.bf16.msra.mxu0 0
  %322 = vmatprep.subr.bf16.mxu0 0
  %323 = vmatpush2.bf16.msra.mxu0 0
  %324 = vmatprep.subr.bf16.mxu0 0
  %325 = vmatpush2.bf16.msra.mxu0 0
  %326 = vmatprep.subr.bf16.mxu0 0
  %327 = vmatpush2.bf16.msra.mxu0 0
  %328 = vmatprep.subr.bf16.mxu0 0
  %329 = vmatpush2.bf16.msra.mxu0 0
  %330 = vmatprep.subr.bf16.mxu0 0
  %331 = vmatpush2.bf16.msra.mxu0 0
  %332 = vmatprep.subr.bf16.mxu0 0
  %333 = vmatpush2.bf16.msra.mxu0 0
  %334 = vmatprep.mubr.bf16.mxu0 0
  %335 = vmatmul.mubr.bf16.gmra.mxu0 %v297
  %v336 = vpop.f32.mrf.mxu0
  %v337 = vadd.f32 0.0, %v336
  %v338 = vpop.f32.mrf.mxu0
  %v339 = vpop.f32.mrf.mxu0
  %v340 = vadd.f32 0.0, %v339
  %v341 = vpop.f32.mrf.mxu0
  %342 = vdwg.mxu0
  %344 = vset.pattern.permute.xlu0 0
  %345 = vperm.xlu0 %344, %v238
  %v346 = vpop.permute.xlu0 %345
  %v348 = vmul.f32 %v286, %v346
  %350 = vset.pattern.permute.xlu0 0
  %351 = vperm.xlu0 %350, %v241
  %v352 = vpop.permute.xlu0 %351
  %v354 = vadd.f32 %v348, %v352
  %v355 = vxor.u32 %v354, 2147483648
  %v356 = vmul.f32 %v355, 1.442695
  %v357 = vpow.pop %v356
  %v358 = vadd.f32 %v357, 1.0
  %v359 = vrcp.pop %v358
  %v360 = vmul.f32 1.0, %v359
  %v361 = vmul.f32 %v354, %v360
  %363 = vset.pattern.permute.xlu0 0
  %364 = vperm.xlu0 %363, %v239
  %v365 = vpop.permute.xlu0 %364
  %368 = vset.pattern.permute.xlu0 0
  %369 = vperm.xlu0 %368, %v240
  %v370 = vpop.permute.xlu0 %369
  %v372 = vmul.f32 %v337, %v365
  %v373 = vmul.f32 %v340, %v370
  %375 = vset.pattern.permute.xlu0 0
  %376 = vperm.xlu0 %375, %v242
  %v377 = vpop.permute.xlu0 %376
  %380 = vset.pattern.permute.xlu0 0
  %381 = vperm.xlu0 %380, %v243
  %v382 = vpop.permute.xlu0 %381
  %v384 = vadd.f32 %v372, %v377
  %v385 = vadd.f32 %v373, %v382
  %v386 = vxor.u32 %v384, 2147483648
  %v387 = vxor.u32 %v385, 2147483648
  %v388 = vmul.f32 %v386, 1.442695
  %v389 = vpow.pop %v388
  %v390 = vmul.f32 %v387, 1.442695
  %v391 = vpow.pop %v390
  %v392 = vadd.f32 %v389, 1.0
  %v393 = vadd.f32 %v391, 1.0
  %v394 = vrcp.pop %v392
  %v395 = vmul.f32 1.0, %v394
  %v396 = vrcp.pop %v393
  %v397 = vmul.f32 1.0, %v396
  %v398 = vmul.f32 %v384, %v395
  %v399 = vmul.f32 %v385, %v397
  %v400 = vld [vmem:[%s5] sm:$0xf]
  %v401 = vld [vmem:[%s5 + $0x4] sm:$0xf]
  %v402 = vld [vmem:[%s5 + $0x8] sm:$0xf]
  %v403 = vld [vmem:[%s6] sm:$0xff]
  %v404 = vld [vmem:[%s6 + $0x8] sm:$0xff]
  %v405 = vld [vmem:[%s6 + $0x10] sm:$0xff]
  %v406 = vld [vmem:[%s7] sm:$0xff]
  %v407 = vld [vmem:[%s7 + $0x8] sm:$0xff]
  %v408 = vld [vmem:[%s7 + $0x10] sm:$0xff]
  %v409 = vpack.c.bf16 %v361, %v361
  %v411 = vsel %vm123, %v400, 0
  %v414 = vsel %vm154, %v409, 0
  %416 = vmatprep.subr.bf16.mxu0 0
  %417 = vmatpush1.bf16.msra.mxu0 0
  %418 = vmatprep.subr.bf16.mxu0 0
  %419 = vmatpush1.bf16.msra.mxu0 0
  %420 = vmatprep.subr.bf16.mxu0 0
  %421 = vmatpush1.bf16.msra.mxu0 0
  %422 = vmatprep.subr.bf16.mxu0 0
  %423 = vmatpush1.bf16.msra.mxu0 0
  %424 = vmatprep.subr.bf16.mxu0 0
  %425 = vmatpush1.bf16.msra.mxu0 0
  %426 = vmatprep.subr.bf16.mxu0 0
  %427 = vmatpush1.bf16.msra.mxu0 0
  %428 = vmatprep.subr.bf16.mxu0 0
  %429 = vmatpush1.bf16.msra.mxu0 0
  %430 = vmatprep.subr.bf16.mxu0 0
  %431 = vmatpush1.bf16.msra.mxu0 %v414
  %432 = vmatprep.subr.bf16.mxu0 0
  %433 = vmatpush2.bf16.msra.mxu0 0
  %434 = vmatprep.subr.bf16.mxu0 0
  %435 = vmatpush2.bf16.msra.mxu0 0
  %436 = vmatprep.subr.bf16.mxu0 0
  %437 = vmatpush2.bf16.msra.mxu0 0
  %438 = vmatprep.subr.bf16.mxu0 0
  %439 = vmatpush2.bf16.msra.mxu0 0
  %440 = vmatprep.subr.bf16.mxu0 0
  %441 = vmatpush2.bf16.msra.mxu0 0
  %442 = vmatprep.subr.bf16.mxu0 0
  %443 = vmatpush2.bf16.msra.mxu0 0
  %444 = vmatprep.subr.bf16.mxu0 0
  %445 = vmatpush2.bf16.msra.mxu0 0
  %446 = vmatprep.subr.bf16.mxu0 0
  %447 = vmatpush2.bf16.msra.mxu0 0
  %448 = vmatprep.mubr.bf16.mxu0 0
  %449 = vmatmul.mubr.bf16.gmra.mxu0 %v411
  %v450 = vpop.f32.mrf.mxu0
  %v451 = vadd.f32 0.0, %v450
  %v452 = vpop.f32.mrf.mxu0
  %v453 = vpop.f32.mrf.mxu0
  %v454 = vpop.f32.mrf.mxu0
  %455 = vdwg.mxu0
  %457 = vset.pattern.permute.xlu0 0
  %458 = vperm.xlu0 %457, %v403
  %v459 = vpop.permute.xlu0 %458
  %v461 = vmul.f32 %v451, %v459
  %463 = vset.pattern.permute.xlu0 0
  %464 = vperm.xlu0 %463, %v406
  %v465 = vpop.permute.xlu0 %464
  %v467 = vadd.f32 %v461, %v465
  %v468 = vxor.u32 %v467, 2147483648
  %v469 = vmul.f32 %v468, 1.442695
  %v470 = vpow.pop %v469
  %v471 = vadd.f32 %v470, 1.0
  %v472 = vrcp.pop %v471
  %v473 = vmul.f32 1.0, %v472
  %v474 = vmul.f32 %v467, %v473
  %v475 = vpack.c.bf16 %v398, %v398
  %v477 = vsel %vm123, %v401, 0
  %v480 = vsel %vm154, %v475, 0
  %482 = vmatprep.subr.bf16.mxu0 0
  %483 = vmatpush1.bf16.msra.mxu0 0
  %484 = vmatprep.subr.bf16.mxu0 0
  %485 = vmatpush1.bf16.msra.mxu0 0
  %486 = vmatprep.subr.bf16.mxu0 0
  %487 = vmatpush1.bf16.msra.mxu0 0
  %488 = vmatprep.subr.bf16.mxu0 0
  %489 = vmatpush1.bf16.msra.mxu0 0
  %490 = vmatprep.subr.bf16.mxu0 0
  %491 = vmatpush1.bf16.msra.mxu0 0
  %492 = vmatprep.subr.bf16.mxu0 0
  %493 = vmatpush1.bf16.msra.mxu0 0
  %494 = vmatprep.subr.bf16.mxu0 0
  %495 = vmatpush1.bf16.msra.mxu0 0
  %496 = vmatprep.subr.bf16.mxu0 0
  %497 = vmatpush1.bf16.msra.mxu0 %v480
  %498 = vmatprep.subr.bf16.mxu0 0
  %499 = vmatpush2.bf16.msra.mxu0 0
  %500 = vmatprep.subr.bf16.mxu0 0
  %501 = vmatpush2.bf16.msra.mxu0 0
  %502 = vmatprep.subr.bf16.mxu0 0
  %503 = vmatpush2.bf16.msra.mxu0 0
  %504 = vmatprep.subr.bf16.mxu0 0
  %505 = vmatpush2.bf16.msra.mxu0 0
  %506 = vmatprep.subr.bf16.mxu0 0
  %507 = vmatpush2.bf16.msra.mxu0 0
  %508 = vmatprep.subr.bf16.mxu0 0
  %509 = vmatpush2.bf16.msra.mxu0 0
  %510 = vmatprep.subr.bf16.mxu0 0
  %511 = vmatpush2.bf16.msra.mxu0 0
  %512 = vmatprep.subr.bf16.mxu0 0
  %513 = vmatpush2.bf16.msra.mxu0 0
  %514 = vmatprep.mubr.bf16.mxu0 0
  %515 = vmatmul.mubr.bf16.gmra.mxu0 %v477
  %v516 = vpop.f32.mrf.mxu0
  %v517 = vadd.f32 0.0, %v516
  %v518 = vpop.f32.mrf.mxu0
  %v519 = vpop.f32.mrf.mxu0
  %v520 = vpop.f32.mrf.mxu0
  %521 = vdwg.mxu0
  %523 = vset.pattern.permute.xlu0 0
  %524 = vperm.xlu0 %523, %v404
  %v525 = vpop.permute.xlu0 %524
  %v527 = vmul.f32 %v517, %v525
  %529 = vset.pattern.permute.xlu0 0
  %530 = vperm.xlu0 %529, %v407
  %v531 = vpop.permute.xlu0 %530
  %v533 = vadd.f32 %v527, %v531
  %v534 = vxor.u32 %v533, 2147483648
  %v535 = vmul.f32 %v534, 1.442695
  %v536 = vpow.pop %v535
  %v537 = vadd.f32 %v536, 1.0
  %v538 = vrcp.pop %v537
  %v539 = vmul.f32 1.0, %v538
  %v540 = vmul.f32 %v533, %v539
  %v541 = vpack.c.bf16 %v399, %v399
  %v543 = vsel %vm123, %v402, 0
  %v546 = vsel %vm154, %v541, 0
  %548 = vmatprep.subr.bf16.mxu0 0
  %549 = vmatpush1.bf16.msra.mxu0 0
  %550 = vmatprep.subr.bf16.mxu0 0
  %551 = vmatpush1.bf16.msra.mxu0 0
  %552 = vmatprep.subr.bf16.mxu0 0
  %553 = vmatpush1.bf16.msra.mxu0 0
  %554 = vmatprep.subr.bf16.mxu0 0
  %555 = vmatpush1.bf16.msra.mxu0 0
  %556 = vmatprep.subr.bf16.mxu0 0
  %557 = vmatpush1.bf16.msra.mxu0 0
  %558 = vmatprep.subr.bf16.mxu0 0
  %559 = vmatpush1.bf16.msra.mxu0 0
  %560 = vmatprep.subr.bf16.mxu0 0
  %561 = vmatpush1.bf16.msra.mxu0 0
  %562 = vmatprep.subr.bf16.mxu0 0
  %563 = vmatpush1.bf16.msra.mxu0 %v546
  %564 = vmatprep.subr.bf16.mxu0 0
  %565 = vmatpush2.bf16.msra.mxu0 0
  %566 = vmatprep.subr.bf16.mxu0 0
  %567 = vmatpush2.bf16.msra.mxu0 0
  %568 = vmatprep.subr.bf16.mxu0 0
  %569 = vmatpush2.bf16.msra.mxu0 0
  %570 = vmatprep.subr.bf16.mxu0 0
  %571 = vmatpush2.bf16.msra.mxu0 0
  %572 = vmatprep.subr.bf16.mxu0 0
  %573 = vmatpush2.bf16.msra.mxu0 0
  %574 = vmatprep.subr.bf16.mxu0 0
  %575 = vmatpush2.bf16.msra.mxu0 0
  %576 = vmatprep.subr.bf16.mxu0 0
  %577 = vmatpush2.bf16.msra.mxu0 0
  %578 = vmatprep.subr.bf16.mxu0 0
  %579 = vmatpush2.bf16.msra.mxu0 0
  %580 = vmatprep.mubr.bf16.mxu0 0
  %581 = vmatmul.mubr.bf16.gmra.mxu0 %v543
  %v582 = vpop.f32.mrf.mxu0
  %v583 = vadd.f32 0.0, %v582
  %v584 = vpop.f32.mrf.mxu0
  %v585 = vpop.f32.mrf.mxu0
  %v586 = vpop.f32.mrf.mxu0
  %587 = vdwg.mxu0
  %589 = vset.pattern.permute.xlu0 0
  %590 = vperm.xlu0 %589, %v405
  %v591 = vpop.permute.xlu0 %590
  %v593 = vmul.f32 %v583, %v591
  %595 = vset.pattern.permute.xlu0 0
  %596 = vperm.xlu0 %595, %v408
  %v597 = vpop.permute.xlu0 %596
  %v599 = vadd.f32 %v593, %v597
  %v600 = vxor.u32 %v599, 2147483648
  %v601 = vmul.f32 %v600, 1.442695
  %v602 = vpow.pop %v601
  %v603 = vadd.f32 %v602, 1.0
  %v604 = vrcp.pop %v603
  %v605 = vmul.f32 1.0, %v604
  %v606 = vmul.f32 %v599, %v605
  %608 = vrot.lane.b32.xlu0 %v474, 64
  %v609 = vpop.permute.xlu0 %608
  %612 = vrot.lane.b32.xlu0 %v540, 64
  %v613 = vpop.permute.xlu0 %612
  %616 = vrot.lane.b32.xlu0 %v606, 64
  %v617 = vpop.permute.xlu0 %616
  %v619 = vpack.c.bf16 %v609, %v474
  %v620 = vld [vmem:[%s8] sm:$0xf]
  %v621 = vld [vmem:[%s8 + $0x4] sm:$0xf]
  %v622 = vld [vmem:[%s8 + $0x8] sm:$0xf]
  %v623 = vld [vmem:[%s8 + $0xc] sm:$0xf]
  %v624 = vld [vmem:[%s8 + $0x10] sm:$0xf]
  %v625 = vld [vmem:[%s8 + $0x14] sm:$0xf]
  %v626 = vld [vmem:[%s8 + $0x18] sm:$0xf]
  %v627 = vld [vmem:[%s8 + $0x1c] sm:$0xf]
  %v628 = vld [vmem:[%s11] sm:$0x1]
  %v630 = vlaneseq
  %v631 = vshrl.u32 %v630, 7
  %v632 = vsub.s32 0, %v631
  %v633 = vrot.slane %v628, %v632
  %v643 = vunpack.c.l.b16 %v620
  %v644 = vunpack.c.l.b16 %v621
  %v645 = vunpack.c.l.b16 %v622
  %v646 = vunpack.c.l.b16 %v623
  %v647 = vunpack.c.l.b16 %v624
  %v648 = vunpack.c.l.b16 %v625
  %v649 = vunpack.c.l.b16 %v626
  %v650 = vunpack.c.l.b16 %v627
  %v651 = vpack.c.b16 %v644, %v643
  %v652 = vpack.c.b16 %v646, %v645
  %v653 = vpack.c.b16 %v648, %v647
  %v654 = vpack.c.b16 %v650, %v649
  %vm659 = vcmask 523264
  %v661 = vsel %vm659, %v619, 0
  %663 = vmatprep.subr.bf16.mxu0 0
  %664 = vmatpush1.bf16.msra.mxu0 0
  %665 = vmatprep.subr.bf16.mxu0 0
  %666 = vmatpush1.bf16.msra.mxu0 0
  %667 = vmatprep.subr.bf16.mxu0 0
  %668 = vmatpush1.bf16.msra.mxu0 0
  %669 = vmatprep.subr.bf16.mxu0 0
  %670 = vmatpush1.bf16.msra.mxu0 0
  %671 = vmatprep.subr.bf16.mxu0 0
  %672 = vmatpush1.bf16.msra.mxu0 %v654
  %673 = vmatprep.subr.bf16.mxu0 0
  %674 = vmatpush1.bf16.msra.mxu0 %v653
  %675 = vmatprep.subr.bf16.mxu0 0
  %676 = vmatpush1.bf16.msra.mxu0 %v652
  %677 = vmatprep.subr.bf16.mxu0 0
  %678 = vmatpush1.bf16.msra.mxu0 %v651
  %679 = vmatprep.subr.bf16.mxu0 0
  %680 = vmatpush2.bf16.msra.mxu0 0
  %681 = vmatprep.subr.bf16.mxu0 0
  %682 = vmatpush2.bf16.msra.mxu0 0
  %683 = vmatprep.subr.bf16.mxu0 0
  %684 = vmatpush2.bf16.msra.mxu0 0
  %685 = vmatprep.subr.bf16.mxu0 0
  %686 = vmatpush2.bf16.msra.mxu0 0
  %687 = vmatprep.subr.bf16.mxu0 0
  %688 = vmatpush2.bf16.msra.mxu0 0
  %689 = vmatprep.subr.bf16.mxu0 0
  %690 = vmatpush2.bf16.msra.mxu0 0
  %691 = vmatprep.subr.bf16.mxu0 0
  %692 = vmatpush2.bf16.msra.mxu0 0
  %693 = vmatprep.subr.bf16.mxu0 0
  %694 = vmatpush2.bf16.msra.mxu0 0
  %695 = vmatprep.mubr.bf16.mxu0 0
  %696 = vmatmul.mubr.bf16.gmra.mxu0 %v661
  %v697 = vpop.f32.mrf.mxu0
  %v698 = vadd.f32 %v633, %v697
  %v699 = vpop.f32.mrf.mxu0
  %v700 = vpop.f32.mrf.mxu0
  %v701 = vadd.f32 %v633, %v700
  %v702 = vpop.f32.mrf.mxu0
  %703 = vdwg.mxu0
  %v704 = vpack.c.bf16 %v613, %v540
  %v705 = vld [vmem:[%s9] sm:$0xf]
  %v706 = vld [vmem:[%s9 + $0x4] sm:$0xf]
  %v707 = vld [vmem:[%s9 + $0x8] sm:$0xf]
  %v708 = vld [vmem:[%s9 + $0xc] sm:$0xf]
  %v709 = vld [vmem:[%s9 + $0x10] sm:$0xf]
  %v710 = vld [vmem:[%s9 + $0x14] sm:$0xf]
  %v711 = vld [vmem:[%s9 + $0x18] sm:$0xf]
  %v712 = vld [vmem:[%s9 + $0x1c] sm:$0xf]
  %v713 = vld [vmem:[%s12] sm:$0x1]
  %v715 = vlaneseq
  %v716 = vshrl.u32 %v715, 7
  %v717 = vsub.s32 0, %v716
  %v718 = vrot.slane %v713, %v717
  %v728 = vunpack.c.l.b16 %v705
  %v729 = vunpack.c.l.b16 %v706
  %v730 = vunpack.c.l.b16 %v707
  %v731 = vunpack.c.l.b16 %v708
  %v732 = vunpack.c.l.b16 %v709
  %v733 = vunpack.c.l.b16 %v710
  %v734 = vunpack.c.l.b16 %v711
  %v735 = vunpack.c.l.b16 %v712
  %v736 = vpack.c.b16 %v729, %v728
  %v737 = vpack.c.b16 %v731, %v730
  %v738 = vpack.c.b16 %v733, %v732
  %v739 = vpack.c.b16 %v735, %v734
  %v745 = vsel %vm659, %v704, 0
  %747 = vmatprep.subr.bf16.mxu0 0
  %748 = vmatpush1.bf16.msra.mxu0 0
  %749 = vmatprep.subr.bf16.mxu0 0
  %750 = vmatpush1.bf16.msra.mxu0 0
  %751 = vmatprep.subr.bf16.mxu0 0
  %752 = vmatpush1.bf16.msra.mxu0 0
  %753 = vmatprep.subr.bf16.mxu0 0
  %754 = vmatpush1.bf16.msra.mxu0 0
  %755 = vmatprep.subr.bf16.mxu0 0
  %756 = vmatpush1.bf16.msra.mxu0 %v739
  %757 = vmatprep.subr.bf16.mxu0 0
  %758 = vmatpush1.bf16.msra.mxu0 %v738
  %759 = vmatprep.subr.bf16.mxu0 0
  %760 = vmatpush1.bf16.msra.mxu0 %v737
  %761 = vmatprep.subr.bf16.mxu0 0
  %762 = vmatpush1.bf16.msra.mxu0 %v736
  %763 = vmatprep.subr.bf16.mxu0 0
  %764 = vmatpush2.bf16.msra.mxu0 0
  %765 = vmatprep.subr.bf16.mxu0 0
  %766 = vmatpush2.bf16.msra.mxu0 0
  %767 = vmatprep.subr.bf16.mxu0 0
  %768 = vmatpush2.bf16.msra.mxu0 0
  %769 = vmatprep.subr.bf16.mxu0 0
  %770 = vmatpush2.bf16.msra.mxu0 0
  %771 = vmatprep.subr.bf16.mxu0 0
  %772 = vmatpush2.bf16.msra.mxu0 0
  %773 = vmatprep.subr.bf16.mxu0 0
  %774 = vmatpush2.bf16.msra.mxu0 0
  %775 = vmatprep.subr.bf16.mxu0 0
  %776 = vmatpush2.bf16.msra.mxu0 0
  %777 = vmatprep.subr.bf16.mxu0 0
  %778 = vmatpush2.bf16.msra.mxu0 0
  %779 = vmatprep.mubr.bf16.mxu0 0
  %780 = vmatmul.mubr.bf16.gmra.mxu0 %v745
  %v781 = vpop.f32.mrf.mxu0
  %v782 = vadd.f32 %v718, %v781
  %v783 = vpop.f32.mrf.mxu0
  %v784 = vpop.f32.mrf.mxu0
  %v785 = vadd.f32 %v718, %v784
  %v786 = vpop.f32.mrf.mxu0
  %787 = vdwg.mxu0
  %v788 = vpack.c.bf16 %v617, %v606
  %v789 = vld [vmem:[%s10] sm:$0xf]
  %v790 = vld [vmem:[%s10 + $0x4] sm:$0xf]
  %v791 = vld [vmem:[%s10 + $0x8] sm:$0xf]
  %v792 = vld [vmem:[%s10 + $0xc] sm:$0xf]
  %v793 = vld [vmem:[%s10 + $0x10] sm:$0xf]
  %v794 = vld [vmem:[%s10 + $0x14] sm:$0xf]
  %v795 = vld [vmem:[%s10 + $0x18] sm:$0xf]
  %v796 = vld [vmem:[%s10 + $0x1c] sm:$0xf]
  %v797 = vld [vmem:[%s13] sm:$0x1]
  %v799 = vlaneseq
  %v800 = vshrl.u32 %v799, 7
  %v801 = vsub.s32 0, %v800
  %v802 = vrot.slane %v797, %v801
  %v812 = vunpack.c.l.b16 %v789
  %v813 = vunpack.c.l.b16 %v790
  %v814 = vunpack.c.l.b16 %v791
  %v815 = vunpack.c.l.b16 %v792
  %v816 = vunpack.c.l.b16 %v793
  %v817 = vunpack.c.l.b16 %v794
  %v818 = vunpack.c.l.b16 %v795
  %v819 = vunpack.c.l.b16 %v796
  %v820 = vpack.c.b16 %v813, %v812
  %v821 = vpack.c.b16 %v815, %v814
  %v822 = vpack.c.b16 %v817, %v816
  %v823 = vpack.c.b16 %v819, %v818
  %v829 = vsel %vm659, %v788, 0
  %831 = vmatprep.subr.bf16.mxu0 0
  %832 = vmatpush1.bf16.msra.mxu0 0
  %833 = vmatprep.subr.bf16.mxu0 0
  %834 = vmatpush1.bf16.msra.mxu0 0
  %835 = vmatprep.subr.bf16.mxu0 0
  %836 = vmatpush1.bf16.msra.mxu0 0
  %837 = vmatprep.subr.bf16.mxu0 0
  %838 = vmatpush1.bf16.msra.mxu0 0
  %839 = vmatprep.subr.bf16.mxu0 0
  %840 = vmatpush1.bf16.msra.mxu0 %v823
  %841 = vmatprep.subr.bf16.mxu0 0
  %842 = vmatpush1.bf16.msra.mxu0 %v822
  %843 = vmatprep.subr.bf16.mxu0 0
  %844 = vmatpush1.bf16.msra.mxu0 %v821
  %845 = vmatprep.subr.bf16.mxu0 0
  %846 = vmatpush1.bf16.msra.mxu0 %v820
  %847 = vmatprep.subr.bf16.mxu0 0
  %848 = vmatpush2.bf16.msra.mxu0 0
  %849 = vmatprep.subr.bf16.mxu0 0
  %850 = vmatpush2.bf16.msra.mxu0 0
  %851 = vmatprep.subr.bf16.mxu0 0
  %852 = vmatpush2.bf16.msra.mxu0 0
  %853 = vmatprep.subr.bf16.mxu0 0
  %854 = vmatpush2.bf16.msra.mxu0 0
  %855 = vmatprep.subr.bf16.mxu0 0
  %856 = vmatpush2.bf16.msra.mxu0 0
  %857 = vmatprep.subr.bf16.mxu0 0
  %858 = vmatpush2.bf16.msra.mxu0 0
  %859 = vmatprep.subr.bf16.mxu0 0
  %860 = vmatpush2.bf16.msra.mxu0 0
  %861 = vmatprep.subr.bf16.mxu0 0
  %862 = vmatpush2.bf16.msra.mxu0 0
  %863 = vmatprep.mubr.bf16.mxu0 0
  %864 = vmatmul.mubr.bf16.gmra.mxu0 %v829
  %v865 = vpop.f32.mrf.mxu0
  %v866 = vadd.f32 %v802, %v865
  %v867 = vpop.f32.mrf.mxu0
  %v868 = vpop.f32.mrf.mxu0
  %v869 = vadd.f32 %v802, %v868
  %v870 = vpop.f32.mrf.mxu0
  %871 = vdwg.mxu0
  %v872 = vld [vmem:[%s20] sm:$0xf]
  %v873 = vld [vmem:[%s20 + $0x4] sm:$0xf]
  %v874 = vld [vmem:[%s20 + $0x8] sm:$0xf]
  %v875 = vld [vmem:[%s20 + $0xc] sm:$0xf]
  %v876 = vld [vmem:[%s20 + $0x10] sm:$0xf]
  %v877 = vld [vmem:[%s20 + $0x14] sm:$0xf]
  %v878 = vld [vmem:[%s20 + $0x18] sm:$0xf]
  %v879 = vld [vmem:[%s20 + $0x1c] sm:$0xf]
  %v880 = vld [vmem:[%s21] sm:$0xf]
  %v881 = vmul.f32 %v698, %v782
  %v882 = vmul.f32 %v698, %v785
  %v883 = vmul.f32 %v701, %v782
  %v884 = vmul.f32 %v701, %v785
  %v885 = vpack.c.bf16 %v882, %v881
  %v886 = vpack.c.bf16 %v884, %v883
  %v895 = vunpack.c.l.b16 %v872
  %v896 = vunpack.c.l.b16 %v873
  %v897 = vunpack.c.l.b16 %v874
  %v898 = vunpack.c.l.b16 %v875
  %v899 = vunpack.c.l.b16 %v876
  %v900 = vunpack.c.l.b16 %v877
  %v901 = vunpack.c.l.b16 %v878
  %v902 = vunpack.c.l.b16 %v879
  %v903 = vpack.c.b16 %v896, %v895
  %v904 = vpack.c.b16 %v898, %v897
  %v905 = vpack.c.b16 %v900, %v899
  %v906 = vpack.c.b16 %v902, %v901
  %v912 = vsel %vm659, %v885, 0
  %v915 = vsel %vm659, %v886, 0
  %917 = vmatprep.subr.bf16.mxu0 0
  %918 = vmatpush1.bf16.msra.mxu0 0
  %919 = vmatprep.subr.bf16.mxu0 0
  %920 = vmatpush1.bf16.msra.mxu0 0
  %921 = vmatprep.subr.bf16.mxu0 0
  %922 = vmatpush1.bf16.msra.mxu0 0
  %923 = vmatprep.subr.bf16.mxu0 0
  %924 = vmatpush1.bf16.msra.mxu0 0
  %925 = vmatprep.subr.bf16.mxu0 0
  %926 = vmatpush1.bf16.msra.mxu0 %v906
  %927 = vmatprep.subr.bf16.mxu0 0
  %928 = vmatpush1.bf16.msra.mxu0 %v905
  %929 = vmatprep.subr.bf16.mxu0 0
  %930 = vmatpush1.bf16.msra.mxu0 %v904
  %931 = vmatprep.subr.bf16.mxu0 0
  %932 = vmatpush1.bf16.msra.mxu0 %v903
  %933 = vmatprep.subr.bf16.mxu0 0
  %934 = vmatpush2.bf16.msra.mxu0 0
  %935 = vmatprep.subr.bf16.mxu0 0
  %936 = vmatpush2.bf16.msra.mxu0 0
  %937 = vmatprep.subr.bf16.mxu0 0
  %938 = vmatpush2.bf16.msra.mxu0 0
  %939 = vmatprep.subr.bf16.mxu0 0
  %940 = vmatpush2.bf16.msra.mxu0 0
  %941 = vmatprep.subr.bf16.mxu0 0
  %942 = vmatpush2.bf16.msra.mxu0 0
  %943 = vmatprep.subr.bf16.mxu0 0
  %944 = vmatpush2.bf16.msra.mxu0 0
  %945 = vmatprep.subr.bf16.mxu0 0
  %946 = vmatpush2.bf16.msra.mxu0 0
  %947 = vmatprep.subr.bf16.mxu0 0
  %948 = vmatpush2.bf16.msra.mxu0 0
  %949 = vmatprep.mubr.bf16.mxu0 0
  %950 = vmatmul.mubr.bf16.gmra.mxu0 %v912
  %v951 = vpop.f32.mrf.mxu0
  %v952 = vadd.f32 0.0, %v951
  %v953 = vpop.f32.mrf.mxu0
  %v954 = vpop.f32.mrf.mxu0
  %v955 = vadd.f32 0.0, %v954
  %v956 = vpop.f32.mrf.mxu0
  %957 = vmatprep.mubr.bf16.mxu0 0
  %958 = vmatmul.mubr.bf16.gmra.mxu0 %v915
  %v959 = vpop.f32.mrf.mxu0
  %v960 = vadd.f32 0.0, %v959
  %v961 = vpop.f32.mrf.mxu0
  %v962 = vpop.f32.mrf.mxu0
  %v963 = vadd.f32 0.0, %v962
  %v964 = vpop.f32.mrf.mxu0
  %965 = vdwg.mxu0
  %v966 = vmul.f32 %v952, 0.35355338
  %v967 = vmul.f32 %v955, 0.35355338
  %v968 = vmul.f32 %v960, 0.35355338
  %v969 = vmul.f32 %v963, 0.35355338
  %v970 = vsel %vm123, %v966, -inf
  %v971 = vsel %vm123, %v967, -inf
  %v972 = vmax.f32 %v970, %v971
  %v973 = vsel %vm123, %v968, -inf
  %v974 = vsel %vm123, %v969, -inf
  %v975 = vmax.f32 %v973, %v974
  %v976 = vsub.f32 %v966, %v972
  %v977 = vsub.f32 %v967, %v972
  %v978 = vsub.f32 %v968, %v975
  %v979 = vsub.f32 %v969, %v975
  %v980 = vmul.f32 %v976, 1.442695
  %v981 = vpow.pop %v980
  %v982 = vmul.f32 %v977, 1.442695
  %v983 = vpow.pop %v982
  %v984 = vmul.f32 %v978, 1.442695
  %v985 = vpow.pop %v984
  %v986 = vmul.f32 %v979, 1.442695
  %v987 = vpow.pop %v986
  %v988 = vsel %vm123, %v981, 0.0
  %v989 = vsel %vm123, %v983, 0.0
  %v990 = vadd.f32 %v988, %v989
  %v991 = vsel %vm123, %v985, 0.0
  %v992 = vsel %vm123, %v987, 0.0
  %v993 = vadd.f32 %v991, %v992
  %v994 = vrcp.pop %v990
  %v995 = vrcp.pop %v993
  %v996 = vmul.f32 %v981, %v994
  %v997 = vmul.f32 %v983, %v994
  %v998 = vmul.f32 %v985, %v995
  %v999 = vmul.f32 %v987, %v995
  %v1000 = vpack.c.bf16 %v997, %v996
  %v1001 = vpack.c.bf16 %v999, %v998
  %v1003 = vsel %vm123, %v1000, 0
  %v1006 = vsel %vm123, %v1001, 0
  %v1009 = vsel %vm154, %v880, 0
  %1011 = vmatprep.subr.bf16.mxu0 0
  %1012 = vmatpush1.bf16.msra.mxu0 0
  %1013 = vmatprep.subr.bf16.mxu0 0
  %1014 = vmatpush1.bf16.msra.mxu0 0
  %1015 = vmatprep.subr.bf16.mxu0 0
  %1016 = vmatpush1.bf16.msra.mxu0 0
  %1017 = vmatprep.subr.bf16.mxu0 0
  %1018 = vmatpush1.bf16.msra.mxu0 0
  %1019 = vmatprep.subr.bf16.mxu0 0
  %1020 = vmatpush1.bf16.msra.mxu0 0
  %1021 = vmatprep.subr.bf16.mxu0 0
  %1022 = vmatpush1.bf16.msra.mxu0 0
  %1023 = vmatprep.subr.bf16.mxu0 0
  %1024 = vmatpush1.bf16.msra.mxu0 0
  %1025 = vmatprep.subr.bf16.mxu0 0
  %1026 = vmatpush1.bf16.msra.mxu0 %v1009
  %1027 = vmatprep.subr.bf16.mxu0 0
  %1028 = vmatpush2.bf16.msra.mxu0 0
  %1029 = vmatprep.subr.bf16.mxu0 0
  %1030 = vmatpush2.bf16.msra.mxu0 0
  %1031 = vmatprep.subr.bf16.mxu0 0
  %1032 = vmatpush2.bf16.msra.mxu0 0
  %1033 = vmatprep.subr.bf16.mxu0 0
  %1034 = vmatpush2.bf16.msra.mxu0 0
  %1035 = vmatprep.subr.bf16.mxu0 0
  %1036 = vmatpush2.bf16.msra.mxu0 0
  %1037 = vmatprep.subr.bf16.mxu0 0
  %1038 = vmatpush2.bf16.msra.mxu0 0
  %1039 = vmatprep.subr.bf16.mxu0 0
  %1040 = vmatpush2.bf16.msra.mxu0 0
  %1041 = vmatprep.subr.bf16.mxu0 0
  %1042 = vmatpush2.bf16.msra.mxu0 0
  %1043 = vmatprep.mubr.bf16.mxu0 0
  %1044 = vmatmul.mubr.bf16.gmra.mxu0 %v1003
  %v1045 = vpop.f32.mrf.mxu0
  %v1046 = vadd.f32 0.0, %v1045
  %v1047 = vpop.f32.mrf.mxu0
  %v1048 = vpop.f32.mrf.mxu0
  %v1049 = vadd.f32 0.0, %v1048
  %v1050 = vpop.f32.mrf.mxu0
  %1051 = vmatprep.mubr.bf16.mxu0 0
  %1052 = vmatmul.mubr.bf16.gmra.mxu0 %v1006
  %v1053 = vpop.f32.mrf.mxu0
  %v1054 = vadd.f32 0.0, %v1053
  %v1055 = vpop.f32.mrf.mxu0
  %v1056 = vpop.f32.mrf.mxu0
  %v1057 = vadd.f32 0.0, %v1056
  %v1058 = vpop.f32.mrf.mxu0
  %1059 = vdwg.mxu0
  %v1060 = vmul.f32 %v1046, %v866
  %v1061 = vmul.f32 %v1049, %v869
  %v1062 = vmul.f32 %v1054, %v866
  %v1063 = vmul.f32 %v1057, %v869
  %v1064 = vsel %vm659, %v1060, 0.0
  %v1065 = vsel %vm659, %v1061, 0.0
  %v1066 = vadd.f32 %v1064, %v1065
  %v1067 = vsel %vm659, %v1062, 0.0
  %v1068 = vsel %vm659, %v1063, 0.0
  %v1069 = vadd.f32 %v1067, %v1068
  %v1070 = vld [vmem:[%s18] sm:$0x1]
  %v1071 = vld [vmem:[%s19] sm:$0x1]
  %v1072 = vpack.c.bf16 %v1069, %v1066
  %v1073 = vld [vmem:[%s14] sm:$0xf]
  %v1074 = vld [vmem:[%s14 + $0x4] sm:$0xf]
  %v1075 = vld [vmem:[%s14 + $0x8] sm:$0xf]
  %v1076 = vld [vmem:[%s14 + $0xc] sm:$0xf]
  %v1077 = vld [vmem:[%s14 + $0x10] sm:$0xf]
  %v1078 = vld [vmem:[%s14 + $0x14] sm:$0xf]
  %v1079 = vld [vmem:[%s14 + $0x18] sm:$0xf]
  %v1080 = vld [vmem:[%s14 + $0x1c] sm:$0xf]
  %v1081 = vld [vmem:[%s15] sm:$0x1]
  %v1083 = vlaneseq
  %v1084 = vshrl.u32 %v1083, 7
  %v1085 = vsub.s32 0, %v1084
  %v1086 = vrot.slane %v1081, %v1085
  %v1096 = vunpack.c.l.b16 %v1073
  %v1097 = vunpack.c.l.b16 %v1074
  %v1098 = vunpack.c.l.b16 %v1075
  %v1099 = vunpack.c.l.b16 %v1076
  %v1100 = vunpack.c.l.b16 %v1077
  %v1101 = vunpack.c.l.b16 %v1078
  %v1102 = vunpack.c.l.b16 %v1079
  %v1103 = vunpack.c.l.b16 %v1080
  %v1104 = vpack.c.b16 %v1097, %v1096
  %v1105 = vpack.c.b16 %v1099, %v1098
  %v1106 = vpack.c.b16 %v1101, %v1100
  %v1107 = vpack.c.b16 %v1103, %v1102
  %v1113 = vsel %vm659, %v1072, 0
  %1115 = vmatprep.subr.bf16.mxu0 0
  %1116 = vmatpush1.bf16.msra.mxu0 0
  %1117 = vmatprep.subr.bf16.mxu0 0
  %1118 = vmatpush1.bf16.msra.mxu0 0
  %1119 = vmatprep.subr.bf16.mxu0 0
  %1120 = vmatpush1.bf16.msra.mxu0 0
  %1121 = vmatprep.subr.bf16.mxu0 0
  %1122 = vmatpush1.bf16.msra.mxu0 0
  %1123 = vmatprep.subr.bf16.mxu0 0
  %1124 = vmatpush1.bf16.msra.mxu0 %v1107
  %1125 = vmatprep.subr.bf16.mxu0 0
  %1126 = vmatpush1.bf16.msra.mxu0 %v1106
  %1127 = vmatprep.subr.bf16.mxu0 0
  %1128 = vmatpush1.bf16.msra.mxu0 %v1105
  %1129 = vmatprep.subr.bf16.mxu0 0
  %1130 = vmatpush1.bf16.msra.mxu0 %v1104
  %1131 = vmatprep.subr.bf16.mxu0 0
  %1132 = vmatpush2.bf16.msra.mxu0 0
  %1133 = vmatprep.subr.bf16.mxu0 0
  %1134 = vmatpush2.bf16.msra.mxu0 0
  %1135 = vmatprep.subr.bf16.mxu0 0
  %1136 = vmatpush2.bf16.msra.mxu0 0
  %1137 = vmatprep.subr.bf16.mxu0 0
  %1138 = vmatpush2.bf16.msra.mxu0 0
  %1139 = vmatprep.subr.bf16.mxu0 0
  %1140 = vmatpush2.bf16.msra.mxu0 0
  %1141 = vmatprep.subr.bf16.mxu0 0
  %1142 = vmatpush2.bf16.msra.mxu0 0
  %1143 = vmatprep.subr.bf16.mxu0 0
  %1144 = vmatpush2.bf16.msra.mxu0 0
  %1145 = vmatprep.subr.bf16.mxu0 0
  %1146 = vmatpush2.bf16.msra.mxu0 0
  %1147 = vmatprep.mubr.bf16.mxu0 0
  %1148 = vmatmul.mubr.bf16.gmra.mxu0 %v1113
  %v1149 = vpop.f32.mrf.mxu0
  %v1150 = vadd.f32 %v1086, %v1149
  %v1151 = vpop.f32.mrf.mxu0
  %v1152 = vpop.f32.mrf.mxu0
  %v1153 = vadd.f32 %v1086, %v1152
  %v1154 = vpop.f32.mrf.mxu0
  %1155 = vdwg.mxu0
  %v1156 = vadd.f32 %v1150, %v474
  %v1157 = vadd.f32 %v1153, %v609
  %v1158 = vsel %vm659, %v1156, 0.0
  %1159 = vadd.xlane.f32.xlu0 %v1158
  %v1160 = vpop.xlane.xlu0 %1159
  %v1161 = vsel %vm659, %v1157, 0.0
  %1162 = vadd.xlane.f32.xlu0 %v1161
  %v1163 = vpop.xlane.xlu0 %1162
  %v1164 = vrcp.pop 64.0
  %v1165 = vmul.f32 %v1160, %v1164
  %v1166 = vmul.f32 %v1163, %v1164
  %v1167 = vsub.f32 %v1156, %v1165
  %v1168 = vsub.f32 %v1157, %v1166
  %v1169 = vmul.f32 %v1167, %v1167
  %v1170 = vmul.f32 %v1168, %v1168
  %v1171 = vsel %vm659, %v1169, 0.0
  %1172 = vadd.xlane.f32.xlu0 %v1171
  %v1173 = vpop.xlane.xlu0 %1172
  %v1174 = vsel %vm659, %v1170, 0.0
  %1175 = vadd.xlane.f32.xlu0 %v1174
  %v1176 = vpop.xlane.xlu0 %1175
  %v1177 = vmul.f32 %v1173, %v1164
  %v1178 = vmul.f32 %v1176, %v1164
  %v1179 = vadd.f32 %v1177, 1e-05
  %v1180 = vadd.f32 %v1178, 1e-05
  %v1181 = vrsqrt.pop %v1179
  %v1182 = vrsqrt.pop %v1180
  %v1183 = vmul.f32 %v1167, %v1181
  %v1184 = vmul.f32 %v1168, %v1182
  %v1186 = vlaneseq
  %v1187 = vshrl.u32 %v1186, 7
  %v1188 = vsub.s32 0, %v1187
  %v1189 = vrot.slane %v1070, %v1188
  %v1191 = vmul.f32 %v1183, %v1189
  %v1192 = vmul.f32 %v1184, %v1189
  %v1194 = vlaneseq
  %v1195 = vshrl.u32 %v1194, 7
  %v1196 = vsub.s32 0, %v1195
  %v1197 = vrot.slane %v1071, %v1196
  %v1199 = vadd.f32 %v1191, %v1197
  %v1200 = vadd.f32 %v1192, %v1197
  %v1201 = vpack.c.bf16 %v1200, %v1199
  %v1202 = vld [vmem:[%s16] sm:$0xf]
  %v1203 = vld [vmem:[%s16 + $0x4] sm:$0xf]
  %v1204 = vld [vmem:[%s16 + $0x8] sm:$0xf]
  %v1205 = vld [vmem:[%s16 + $0xc] sm:$0xf]
  %v1206 = vld [vmem:[%s16 + $0x10] sm:$0xf]
  %v1207 = vld [vmem:[%s16 + $0x14] sm:$0xf]
  %v1208 = vld [vmem:[%s16 + $0x18] sm:$0xf]
  %v1209 = vld [vmem:[%s16 + $0x1c] sm:$0xf]
  %v1210 = vld [vmem:[%s17] sm:$0x1]
  %v1212 = vlaneseq
  %v1213 = vshrl.u32 %v1212, 7
  %v1214 = vsub.s32 0, %v1213
  %v1215 = vrot.slane %v1210, %v1214
  %v1225 = vunpack.c.l.b16 %v1202
  %v1226 = vunpack.c.l.b16 %v1203
  %v1227 = vunpack.c.l.b16 %v1204
  %v1228 = vunpack.c.l.b16 %v1205
  %v1229 = vunpack.c.l.b16 %v1206
  %v1230 = vunpack.c.l.b16 %v1207
  %v1231 = vunpack.c.l.b16 %v1208
  %v1232 = vunpack.c.l.b16 %v1209
  %v1233 = vpack.c.b16 %v1226, %v1225
  %v1234 = vpack.c.b16 %v1228, %v1227
  %v1235 = vpack.c.b16 %v1230, %v1229
  %v1236 = vpack.c.b16 %v1232, %v1231
  %v1242 = vsel %vm659, %v1201, 0
  %1244 = vmatprep.subr.bf16.mxu0 0
  %1245 = vmatpush1.bf16.msra.mxu0 0
  %1246 = vmatprep.subr.bf16.mxu0 0
  %1247 = vmatpush1.bf16.msra.mxu0 0
  %1248 = vmatprep.subr.bf16.mxu0 0
  %1249 = vmatpush1.bf16.msra.mxu0 0
  %1250 = vmatprep.subr.bf16.mxu0 0
  %1251 = vmatpush1.bf16.msra.mxu0 0
  %1252 = vmatprep.subr.bf16.mxu0 0
  %1253 = vmatpush1.bf16.msra.mxu0 %v1236
  %1254 = vmatprep.subr.bf16.mxu0 0
  %1255 = vmatpush1.bf16.msra.mxu0 %v1235
  %1256 = vmatprep.subr.bf16.mxu0 0
  %1257 = vmatpush1.bf16.msra.mxu0 %v1234
  %1258 = vmatprep.subr.bf16.mxu0 0
  %1259 = vmatpush1.bf16.msra.mxu0 %v1233
  %1260 = vmatprep.subr.bf16.mxu0 0
  %1261 = vmatpush2.bf16.msra.mxu0 0
  %1262 = vmatprep.subr.bf16.mxu0 0
  %1263 = vmatpush2.bf16.msra.mxu0 0
  %1264 = vmatprep.subr.bf16.mxu0 0
  %1265 = vmatpush2.bf16.msra.mxu0 0
  %1266 = vmatprep.subr.bf16.mxu0 0
  %1267 = vmatpush2.bf16.msra.mxu0 0
  %1268 = vmatprep.subr.bf16.mxu0 0
  %1269 = vmatpush2.bf16.msra.mxu0 0
  %1270 = vmatprep.subr.bf16.mxu0 0
  %1271 = vmatpush2.bf16.msra.mxu0 0
  %1272 = vmatprep.subr.bf16.mxu0 0
  %1273 = vmatpush2.bf16.msra.mxu0 0
  %1274 = vmatprep.subr.bf16.mxu0 0
  %1275 = vmatpush2.bf16.msra.mxu0 0
  %1276 = vmatprep.mubr.bf16.mxu0 0
  %1277 = vmatmul.mubr.bf16.gmra.mxu0 %v1242
  %v1278 = vpop.f32.mrf.mxu0
  %v1279 = vadd.f32 %v1215, %v1278
  %v1280 = vpop.f32.mrf.mxu0
  %v1281 = vpop.f32.mrf.mxu0
  %v1282 = vadd.f32 %v1215, %v1281
  %v1283 = vpop.f32.mrf.mxu0
  %1284 = vdwg.mxu0
  %v1285 = vadd.f32 %v1199, %v1279
  %v1286 = vadd.f32 %v1200, %v1282
  %v1287 = vsel %vm659, %v1285, 0.0
  %1288 = vadd.xlane.f32.xlu0 %v1287
  %v1289 = vpop.xlane.xlu0 %1288
  %v1290 = vsel %vm659, %v1286, 0.0
  %1291 = vadd.xlane.f32.xlu0 %v1290
  %v1292 = vpop.xlane.xlu0 %1291
  %v1293 = vmul.f32 %v1289, %v1164
  %v1294 = vmul.f32 %v1292, %v1164
  %v1295 = vsub.f32 %v1285, %v1293
  %v1296 = vsub.f32 %v1286, %v1294
  %v1297 = vmul.f32 %v1295, %v1295
  %v1298 = vmul.f32 %v1296, %v1296
  %v1299 = vsel %vm659, %v1297, 0.0
  %1300 = vadd.xlane.f32.xlu0 %v1299
  %v1301 = vpop.xlane.xlu0 %1300
  %v1302 = vsel %vm659, %v1298, 0.0
  %1303 = vadd.xlane.f32.xlu0 %v1302
  %v1304 = vpop.xlane.xlu0 %1303
  %v1305 = vmul.f32 %v1301, %v1164
  %v1306 = vmul.f32 %v1304, %v1164
  %v1307 = vadd.f32 %v1305, 1e-05
  %v1308 = vadd.f32 %v1306, 1e-05
  %v1309 = vrsqrt.pop %v1307
  %v1310 = vrsqrt.pop %v1308
  %v1311 = vmul.f32 %v1295, %v1309
  %v1312 = vmul.f32 %v1296, %v1310
  %v1313 = vmul.f32 %v1311, %v1189
  %v1314 = vmul.f32 %v1312, %v1189
  %v1315 = vadd.f32 %v1313, %v1197
  %v1316 = vadd.f32 %v1314, %v1197
  %1317 = vst.msk [vmem:[%s22] sm:$0xff] %vm659, %v1315
  %1318 = vst.msk [vmem:[%s22 + $0x8] sm:$0xff] %vm659, %v1316
  // Predicated region
  $region90: #{msa_forward.1} parent=0 // pred_check
    _
  $region91: #{msa_forward.1} parent=0 // pred_check_branch
    %1320 = sbr.rel (0) target = $region93
  $region92: #{msa_forward.1} parent=0 // pred_region
    _
  $region93: #{msa_forward.1} parent=0 // pred_fallthru
    _
  // Predicated region
  $region94: #{msa_forward.1} parent=0 // pred_check
    _
  $region95: #{msa_forward.1} parent=0 // pred_check_branch
    %1322 = sbr.rel (0) target = $region97
  $region96: #{msa_forward.1} parent=0 // pred_region
    _
  $region97: #{msa_forward.1} parent=0 // pred_fallthru
    _

</llo_original>
